<compile_context>
chip_gen: v7x
topology: tpu7x:2x2x1
jax: 0.10.0
libtpu: 0.0.40
codegen_flags: <defaults>
</compile_context>

<pallas_src>
import functools

import jax
import jax.numpy as jnp
from jax import lax
from jax.experimental import pallas as pl
from jax.experimental.pallas import tpu as pltpu


def _fused_conv_kernel(x_ref, t1_ref, b1_ref, t2_ref, b2_ref, o_ref,
                       a1_ref, h1_ref, a2_ref, *,
                       block_n, ksz, w_in, oh1, oh2, pad_k1, cdt):
    """Fused conv1+ReLU+conv2+ReLU for `block_n` images.

    x_ref : (B, 1, H, W)              input images (NCHW, Cin=1), f32
    t1_ref: (ksz*W, pad_k1)           lowered conv1 weights (cols lane-padded)
    b1_ref: (1, pad_k1)               conv1 bias tiled over output width (f32)
    t2_ref: (ksz*pad_k1, c2*ow2)      lowered conv2 weights (channel-major cols)
    b2_ref: (1, c2*ow2)               conv2 bias repeated over output width (f32)
    o_ref : (B*oh2, c2*ow2)           lane-dense output tile (f32)
    a1_ref: (B*oh1, ksz*W)            VMEM scratch: conv1 im2row matrix
    h1_ref: (B*oh1, pad_k1)           VMEM scratch: conv1 activation (VMEM-resident)
    a2_ref: (B*oh2, ksz*pad_k1)       VMEM scratch: conv2 im2row matrix
    """
    # ---- conv1: batched im2row along H (static slice copies), one MXU dot --
    for b in range(block_n):
        for k in range(ksz):
            a1_ref[b * oh1:(b + 1) * oh1, k * w_in:(k + 1) * w_in] = (
                x_ref[b, 0, k:k + oh1, :].astype(cdt))
    h1 = jnp.dot(a1_ref[...], t1_ref[...],
                 preferred_element_type=jnp.float32)          # (B*oh1, pad_k1)
    # Pad columns of T1/b1 are zero -> relu(0) = 0, so h1's pad lanes are 0.
    h1_ref[...] = jnp.maximum(h1 + b1_ref[...], 0.0).astype(cdt)

    # ---- conv2: im2row on the lane-aligned, VMEM-resident intermediate -----
    # Per-tap column block is pad_k1 (multiple of 128) wide -> unmasked stores.
    # TODO(synk): the h1 row windows start at sublane (b*oh1 + k) % 8 != 0;
    # if XLU pressure ever shows up, regenerate them with pltpu.roll instead.
    for b in range(block_n):
        for k in range(ksz):
            a2_ref[b * oh2:(b + 1) * oh2, k * pad_k1:(k + 1) * pad_k1] = (
                h1_ref[b * oh1 + k:b * oh1 + k + oh2, :])
    h2 = jnp.dot(a2_ref[...], t2_ref[...],
                 preferred_element_type=jnp.float32)          # (B*oh2, c2*ow2)

    # ---- single lane-dense full-width output store --------------------------
    o_ref[...] = jnp.maximum(h2 + b2_ref[...], 0.0).astype(o_ref.dtype)


def prepare_params(params, h, w, compute_dtype=jnp.bfloat16):
    """One-time weight lowering (Toeplitz / width-unrolled matrices)."""
    w1, b1 = params["w1"], params["b1"]          # (kh, kw, 1, c1), (c1,)
    w2, b2 = params["w2"], params["b2"]          # (kh, kw, c1, c2), (c2,)
    kh, kw, _, c1 = w1.shape
    c2 = w2.shape[3]
    oh1, ow1 = h - kh + 1, w - kw + 1
    oh2, ow2 = oh1 - kh + 1, ow1 - kw + 1
    pad_k1 = ((ow1 * c1 + 127) // 128) * 128     # lane-align 240 -> 256

    # T1[k*W + wi, j*c1 + c] = w1[k, wi - j, 0, c]   (0 <= wi - j < kw)
    t1 = jnp.zeros((kh, w, ow1, c1), jnp.float32)
    for j in range(ow1):
        t1 = t1.at[:, j:j + kw, j, :].set(w1[:, :, 0, :])
    t1 = t1.reshape(kh * w, ow1 * c1)
    t1 = jnp.pad(t1, ((0, 0), (0, pad_k1 - ow1 * c1))).astype(compute_dtype)
    b1r = jnp.pad(jnp.tile(b1, ow1),
                  (0, pad_k1 - ow1 * c1)).reshape(1, pad_k1)   # [j*c1+c]->b1[c]

    # T2[k*pad_k1 + jw*c1 + ci, co*ow2 + j] = w2[k, jw - j, ci, co]
    # (rows for the lane-pad columns of h1 are zero).
    t2 = jnp.zeros((kh, ow1, c1, c2, ow2), jnp.float32)
    for j in range(ow2):
        t2 = t2.at[:, j:j + kw, :, :, j].set(w2)
    t2 = t2.reshape(kh, ow1 * c1, c2 * ow2)
    t2 = jnp.pad(t2, ((0, 0), (0, pad_k1 - ow1 * c1), (0, 0)))
    t2 = t2.reshape(kh * pad_k1, c2 * ow2).astype(compute_dtype)
    b2r = jnp.repeat(b2, ow2).reshape(1, c2 * ow2)             # [co*ow2+j]->b2[co]

    dims = dict(ksz=kh, w_in=w, oh1=oh1, ow1=ow1, c1=c1,
                oh2=oh2, ow2=ow2, c2=c2, pad_k1=pad_k1)
    return {"t1": t1, "b1": b1r, "t2": t2, "b2": b2r,
            "dims": dims, "compute_dtype": compute_dtype}


def model_forward(x_nchw, prepared, *, max_images_per_step=16):
    """Mirrors Model.forward: relu(conv1) -> conv2 -> relu. NCHW in / NCHW out."""
    n, cin, h, w = x_nchw.shape
    d = prepared["dims"]
    cdt = prepared["compute_dtype"]
    ksz, w_in = d["ksz"], d["w_in"]
    oh1, oh2 = d["oh1"], d["oh2"]
    c2, ow2, pad_k1 = d["c2"], d["ow2"], d["pad_k1"]

    # Fold the batch into the matmul M dimension.
    block_n = min(n, max_images_per_step)
    n_pad = ((n + block_n - 1) // block_n) * block_n
    if n_pad != n:
        x_nchw = jnp.pad(x_nchw, ((0, n_pad - n), (0, 0), (0, 0), (0, 0)))
    steps = n_pad // block_n

    kernel = functools.partial(
        _fused_conv_kernel, block_n=block_n, ksz=ksz, w_in=w_in,
        oh1=oh1, oh2=oh2, pad_k1=pad_k1, cdt=cdt)

    m1, k1, n1 = block_n * oh1, ksz * w_in, pad_k1
    m2, k2, n2 = block_n * oh2, ksz * pad_k1, c2 * ow2
    flops = 2 * steps * (m1 * k1 * n1 + m2 * k2 * n2)
    wbytes = ((prepared["t1"].size + prepared["t2"].size)
              * prepared["t1"].dtype.itemsize
              + (prepared["b1"].size + prepared["b2"].size) * 4)
    # Weights are fetched once (constant index_map), input/output per image.
    bytes_accessed = 4 * (n_pad * cin * h * w + n_pad * oh2 * c2 * ow2) + wbytes

    out2d = pl.pallas_call(
        kernel,
        out_shape=jax.ShapeDtypeStruct((n_pad * oh2, c2 * ow2), jnp.float32),
        grid_spec=pltpu.PrefetchScalarGridSpec(
            num_scalar_prefetch=0,
            grid=(steps,),
            in_specs=[
                pl.BlockSpec((block_n, cin, h, w), lambda i: (i, 0, 0, 0)),
                # Constant-index weight blocks: the window never moves, so the
                # Pallas pipeline emitter issues the HBM->VMEM DMA once and
                # keeps the lowered weights resident across grid steps.
                pl.BlockSpec((ksz * w_in, pad_k1), lambda i: (0, 0)),
                pl.BlockSpec((1, pad_k1), lambda i: (0, 0)),
                pl.BlockSpec((ksz * pad_k1, c2 * ow2), lambda i: (0, 0)),
                pl.BlockSpec((1, c2 * ow2), lambda i: (0, 0)),
            ],
            out_specs=pl.BlockSpec((block_n * oh2, c2 * ow2), lambda i: (i, 0)),
            scratch_shapes=[
                pltpu.VMEM((block_n * oh1, ksz * w_in), cdt),    # a1 (im2row #1)
                pltpu.VMEM((block_n * oh1, pad_k1), cdt),        # h1 (intermediate)
                pltpu.VMEM((block_n * oh2, ksz * pad_k1), cdt),  # a2 (im2row #2)
            ]),
        compiler_params=pltpu.CompilerParams(
            dimension_semantics=("parallel",)),
        cost_estimate=pl.CostEstimate(
            flops=flops, transcendentals=0, bytes_accessed=bytes_accessed),
    )(x_nchw, prepared["t1"], prepared["b1"], prepared["t2"], prepared["b2"])

    # Cheap wrapper-side layout: (n_pad*oh2, c2*ow2) -> NCHW (n, c2, oh2, ow2).
    out = out2d.reshape(n_pad, oh2, c2, ow2)[:n]
    return jnp.transpose(out, (0, 2, 1, 3))


def init_params(key):
    """Deterministic init matching the nn.Conv2d shapes (HWIO layout)."""
    k1, k2, k3, k4 = jax.random.split(key, 4)

    def uinit(k, shape, fan_in):
        bound = 1.0 / jnp.sqrt(fan_in)
        return jax.random.uniform(k, shape, jnp.float32, -bound, bound)

    # conv1: Conv2d(1, 20, 5)  -> weight HWIO (5,5,1,20)
    # conv2: Conv2d(20, 20, 5) -> weight HWIO (5,5,20,20)
    return {
        "w1": uinit(k1, (5, 5, 1, 20), 5 * 5 * 1),
        "b1": uinit(k2, (20,), 5 * 5 * 1),
        "w2": uinit(k3, (5, 5, 20, 20), 5 * 5 * 20),
        "b2": uinit(k4, (20,), 5 * 5 * 20),
    }
    # conv3 (Conv2d(20, 30, 5)) is unused in forward, so no params needed.


def reference_forward(x_nchw, params):
    """Pure-JAX reference using lax.conv_general_dilated (NCHW, OIHW)."""
    def conv(x, w_hwio, b):
        w_oihw = jnp.transpose(w_hwio, (3, 2, 0, 1))
        y = lax.conv_general_dilated(
            x, w_oihw, window_strides=(1, 1), padding="VALID",
            dimension_numbers=("NCHW", "OIHW", "NCHW"),
            precision=lax.Precision.HIGHEST)
        return y + b[None, :, None, None]

    x = jnp.maximum(conv(x_nchw, params["w1"], params["b1"]), 0.0)
    x = jnp.maximum(conv(x, params["w2"], params["b2"]), 0.0)
    return x


if __name__ == "__main__":
    key = jax.random.PRNGKey(0)
    kx, kp = jax.random.split(key)

    # Small input consistent with Conv2d(1, 20, 5): batch=2, channels=1, 16x16.
    x = jax.random.normal(kx, (2, 1, 16, 16), dtype=jnp.float32)
    params = init_params(kp)

    ref = jax.block_until_ready(reference_forward(x, params))

    # f32 compute path: validates the Toeplitz lowering exactly.
    prep_f32 = prepare_params(params, 16, 16, compute_dtype=jnp.float32)
    out_f32 = jax.block_until_ready(model_forward(x, prep_f32))
    assert out_f32.shape == (2, 20, 8, 8), out_f32.shape
    assert jnp.allclose(out_f32, ref, atol=1e-3, rtol=1e-3), float(
        jnp.max(jnp.abs(out_f32 - ref)))

    # bf16 compute path (perf default for v6e/v7x MXUs, f32 accumulate).
    prep_bf16 = prepare_params(params, 16, 16, compute_dtype=jnp.bfloat16)
    out_bf16 = jax.block_until_ready(model_forward(x, prep_bf16))
    assert out_bf16.shape == (2, 20, 8, 8), out_bf16.shape
    assert jnp.allclose(out_bf16, ref, atol=5e-2, rtol=5e-2), float(
        jnp.max(jnp.abs(out_bf16 - ref)))

    print("KERNEL_OK")
</pallas_src>

<mosaic_0001>
module attributes {stable_mosaic.version = 11 : i64} {
  func.func @_fused_conv_kernel(%arg0: i32, %arg1: memref<2x1x16x16xf32, #tpu.memory_space<vmem>>, %arg2: memref<80x256xf32, #tpu.memory_space<vmem>>, %arg3: memref<1x256xf32, #tpu.memory_space<vmem>>, %arg4: memref<1280x160xf32, #tpu.memory_space<vmem>>, %arg5: memref<1x160xf32, #tpu.memory_space<vmem>>, %arg6: memref<16x160xf32, #tpu.memory_space<vmem>>, %arg7: memref<24x80xf32, #tpu.memory_space<vmem>>, %arg8: memref<24x256xf32, #tpu.memory_space<vmem>>, %arg9: memref<16x1280xf32, #tpu.memory_space<vmem>>) attributes {dimension_semantics = [#tpu.dimension_semantics<parallel>], iteration_bounds = array<i64: 1>, scalar_prefetch = 0 : i64, scratch_operands = 3 : i64, tpu.core_type = #tpu.core_type<tc>, window_params = [{transform_indices = @transform_0, window_bounds = array<i64: 2, 1, 16, 16>}, {pipeline_mode = #tpu.pipeline_mode<synchronous>, transform_indices = @transform_1, window_bounds = array<i64: 80, 256>}, {pipeline_mode = #tpu.pipeline_mode<synchronous>, transform_indices = @transform_2, window_bounds = array<i64: 1, 256>}, {pipeline_mode = #tpu.pipeline_mode<synchronous>, transform_indices = @transform_3, window_bounds = array<i64: 1280, 160>}, {pipeline_mode = #tpu.pipeline_mode<synchronous>, transform_indices = @transform_4, window_bounds = array<i64: 1, 160>}, {transform_indices = @transform_5, window_bounds = array<i64: 16, 160>}]} {
    %c0 = arith.constant 0 : index
    %c0_0 = arith.constant 0 : index
    %c0_1 = arith.constant 0 : index
    %c0_2 = arith.constant 0 : index
    %0 = vector.load %arg1[%c0, %c0_0, %c0_1, %c0_2] : memref<2x1x16x16xf32, #tpu.memory_space<vmem>>, vector<1x1x12x16xf32>
    %1 = vector.shape_cast %0 : vector<1x1x12x16xf32> to vector<12x16xf32>
    %c0_3 = arith.constant 0 : index
    %c0_4 = arith.constant 0 : index
    %2 = vector.load %arg7[%c0_3, %c0_4] : memref<24x80xf32, #tpu.memory_space<vmem>>, vector<12x16xf32>
    tpu.vector_store %arg7[%c0_3, %c0_4], %1 {strides = array<i32>} : memref<24x80xf32, #tpu.memory_space<vmem>>, vector<12x16xf32>,
    %c0_5 = arith.constant 0 : index
    %c0_6 = arith.constant 0 : index
    %c1 = arith.constant 1 : index
    %c0_7 = arith.constant 0 : index
    %3 = vector.load %arg1[%c0_5, %c0_6, %c1, %c0_7] : memref<2x1x16x16xf32, #tpu.memory_space<vmem>>, vector<1x1x12x16xf32>
    %4 = vector.shape_cast %3 : vector<1x1x12x16xf32> to vector<12x16xf32>
    %c0_8 = arith.constant 0 : index
    %c16 = arith.constant 16 : index
    %5 = vector.load %arg7[%c0_8, %c16] : memref<24x80xf32, #tpu.memory_space<vmem>>, vector<12x16xf32>
    tpu.vector_store %arg7[%c0_8, %c16], %4 {strides = array<i32>} : memref<24x80xf32, #tpu.memory_space<vmem>>, vector<12x16xf32>,
    %c0_9 = arith.constant 0 : index
    %c0_10 = arith.constant 0 : index
    %c2 = arith.constant 2 : index
    %c0_11 = arith.constant 0 : index
    %6 = vector.load %arg1[%c0_9, %c0_10, %c2, %c0_11] : memref<2x1x16x16xf32, #tpu.memory_space<vmem>>, vector<1x1x12x16xf32>
    %7 = vector.shape_cast %6 : vector<1x1x12x16xf32> to vector<12x16xf32>
    %c0_12 = arith.constant 0 : index
    %c32 = arith.constant 32 : index
    %8 = vector.load %arg7[%c0_12, %c32] : memref<24x80xf32, #tpu.memory_space<vmem>>, vector<12x16xf32>
    tpu.vector_store %arg7[%c0_12, %c32], %7 {strides = array<i32>} : memref<24x80xf32, #tpu.memory_space<vmem>>, vector<12x16xf32>,
    %c0_13 = arith.constant 0 : index
    %c0_14 = arith.constant 0 : index
    %c3 = arith.constant 3 : index
    %c0_15 = arith.constant 0 : index
    %9 = vector.load %arg1[%c0_13, %c0_14, %c3, %c0_15] : memref<2x1x16x16xf32, #tpu.memory_space<vmem>>, vector<1x1x12x16xf32>
    %10 = vector.shape_cast %9 : vector<1x1x12x16xf32> to vector<12x16xf32>
    %c0_16 = arith.constant 0 : index
    %c48 = arith.constant 48 : index
    %11 = vector.load %arg7[%c0_16, %c48] : memref<24x80xf32, #tpu.memory_space<vmem>>, vector<12x16xf32>
    tpu.vector_store %arg7[%c0_16, %c48], %10 {strides = array<i32>} : memref<24x80xf32, #tpu.memory_space<vmem>>, vector<12x16xf32>,
    %c0_17 = arith.constant 0 : index
    %c0_18 = arith.constant 0 : index
    %c4 = arith.constant 4 : index
    %c0_19 = arith.constant 0 : index
    %12 = vector.load %arg1[%c0_17, %c0_18, %c4, %c0_19] : memref<2x1x16x16xf32, #tpu.memory_space<vmem>>, vector<1x1x12x16xf32>
    %13 = vector.shape_cast %12 : vector<1x1x12x16xf32> to vector<12x16xf32>
    %c0_20 = arith.constant 0 : index
    %c64 = arith.constant 64 : index
    %14 = vector.load %arg7[%c0_20, %c64] : memref<24x80xf32, #tpu.memory_space<vmem>>, vector<12x16xf32>
    tpu.vector_store %arg7[%c0_20, %c64], %13 {strides = array<i32>} : memref<24x80xf32, #tpu.memory_space<vmem>>, vector<12x16xf32>,
    %c1_21 = arith.constant 1 : index
    %c0_22 = arith.constant 0 : index
    %c0_23 = arith.constant 0 : index
    %c0_24 = arith.constant 0 : index
    %15 = vector.load %arg1[%c1_21, %c0_22, %c0_23, %c0_24] : memref<2x1x16x16xf32, #tpu.memory_space<vmem>>, vector<1x1x12x16xf32>
    %16 = vector.shape_cast %15 : vector<1x1x12x16xf32> to vector<12x16xf32>
    %c12 = arith.constant 12 : index
    %c0_25 = arith.constant 0 : index
    %17 = vector.load %arg7[%c12, %c0_25] : memref<24x80xf32, #tpu.memory_space<vmem>>, vector<12x16xf32>
    tpu.vector_store %arg7[%c12, %c0_25], %16 {strides = array<i32>} : memref<24x80xf32, #tpu.memory_space<vmem>>, vector<12x16xf32>,
    %c1_26 = arith.constant 1 : index
    %c0_27 = arith.constant 0 : index
    %c1_28 = arith.constant 1 : index
    %c0_29 = arith.constant 0 : index
    %18 = vector.load %arg1[%c1_26, %c0_27, %c1_28, %c0_29] : memref<2x1x16x16xf32, #tpu.memory_space<vmem>>, vector<1x1x12x16xf32>
    %19 = vector.shape_cast %18 : vector<1x1x12x16xf32> to vector<12x16xf32>
    %c12_30 = arith.constant 12 : index
    %c16_31 = arith.constant 16 : index
    %20 = vector.load %arg7[%c12_30, %c16_31] : memref<24x80xf32, #tpu.memory_space<vmem>>, vector<12x16xf32>
    tpu.vector_store %arg7[%c12_30, %c16_31], %19 {strides = array<i32>} : memref<24x80xf32, #tpu.memory_space<vmem>>, vector<12x16xf32>,
    %c1_32 = arith.constant 1 : index
    %c0_33 = arith.constant 0 : index
    %c2_34 = arith.constant 2 : index
    %c0_35 = arith.constant 0 : index
    %21 = vector.load %arg1[%c1_32, %c0_33, %c2_34, %c0_35] : memref<2x1x16x16xf32, #tpu.memory_space<vmem>>, vector<1x1x12x16xf32>
    %22 = vector.shape_cast %21 : vector<1x1x12x16xf32> to vector<12x16xf32>
    %c12_36 = arith.constant 12 : index
    %c32_37 = arith.constant 32 : index
    %23 = vector.load %arg7[%c12_36, %c32_37] : memref<24x80xf32, #tpu.memory_space<vmem>>, vector<12x16xf32>
    tpu.vector_store %arg7[%c12_36, %c32_37], %22 {strides = array<i32>} : memref<24x80xf32, #tpu.memory_space<vmem>>, vector<12x16xf32>,
    %c1_38 = arith.constant 1 : index
    %c0_39 = arith.constant 0 : index
    %c3_40 = arith.constant 3 : index
    %c0_41 = arith.constant 0 : index
    %24 = vector.load %arg1[%c1_38, %c0_39, %c3_40, %c0_41] : memref<2x1x16x16xf32, #tpu.memory_space<vmem>>, vector<1x1x12x16xf32>
    %25 = vector.shape_cast %24 : vector<1x1x12x16xf32> to vector<12x16xf32>
    %c12_42 = arith.constant 12 : index
    %c48_43 = arith.constant 48 : index
    %26 = vector.load %arg7[%c12_42, %c48_43] : memref<24x80xf32, #tpu.memory_space<vmem>>, vector<12x16xf32>
    tpu.vector_store %arg7[%c12_42, %c48_43], %25 {strides = array<i32>} : memref<24x80xf32, #tpu.memory_space<vmem>>, vector<12x16xf32>,
    %c1_44 = arith.constant 1 : index
    %c0_45 = arith.constant 0 : index
    %c4_46 = arith.constant 4 : index
    %c0_47 = arith.constant 0 : index
    %27 = vector.load %arg1[%c1_44, %c0_45, %c4_46, %c0_47] : memref<2x1x16x16xf32, #tpu.memory_space<vmem>>, vector<1x1x12x16xf32>
    %28 = vector.shape_cast %27 : vector<1x1x12x16xf32> to vector<12x16xf32>
    %c12_48 = arith.constant 12 : index
    %c64_49 = arith.constant 64 : index
    %29 = vector.load %arg7[%c12_48, %c64_49] : memref<24x80xf32, #tpu.memory_space<vmem>>, vector<12x16xf32>
    tpu.vector_store %arg7[%c12_48, %c64_49], %28 {strides = array<i32>} : memref<24x80xf32, #tpu.memory_space<vmem>>, vector<12x16xf32>,
    %c0_50 = arith.constant 0 : index
    %c0_51 = arith.constant 0 : index
    %30 = vector.load %arg7[%c0_50, %c0_51] : memref<24x80xf32, #tpu.memory_space<vmem>>, vector<24x80xf32>
    %c0_52 = arith.constant 0 : index
    %c0_53 = arith.constant 0 : index
    %31 = vector.load %arg2[%c0_52, %c0_53] : memref<80x256xf32, #tpu.memory_space<vmem>>, vector<80x256xf32>
    %cst = arith.constant dense<0.000000e+00> : vector<24x256xf32>
    %32 = tpu.matmul %30, %31, %cst {dimension_numbers = #tpu.dot_dimension_numbers<[1], [0], [0], [1], [0, 0, 1, 1], [], []>} : vector<24x80xf32>, vector<80x256xf32>, vector<24x256xf32> -> vector<24x256xf32>
    %c0_54 = arith.constant 0 : index
    %c0_55 = arith.constant 0 : index
    %33 = vector.load %arg3[%c0_54, %c0_55] : memref<1x256xf32, #tpu.memory_space<vmem>>, vector<1x256xf32>
    %34 = vector.broadcast %33 : vector<1x256xf32> to vector<24x256xf32>
    %35 = arith.addf %32, %34 : vector<24x256xf32>
    %cst_56 = arith.constant 0.000000e+00 : f32
    %36 = vector.broadcast %cst_56 : f32 to vector<24x256xf32>
    %37 = arith.maximumf %35, %36 : vector<24x256xf32>
    %c0_57 = arith.constant 0 : index
    %c0_58 = arith.constant 0 : index
    %38 = vector.load %arg8[%c0_57, %c0_58] : memref<24x256xf32, #tpu.memory_space<vmem>>, vector<24x256xf32>
    tpu.vector_store %arg8[%c0_57, %c0_58], %37 {strides = array<i32>} : memref<24x256xf32, #tpu.memory_space<vmem>>, vector<24x256xf32>,
    %c0_59 = arith.constant 0 : index
    %c0_60 = arith.constant 0 : index
    %39 = vector.load %arg8[%c0_59, %c0_60] : memref<24x256xf32, #tpu.memory_space<vmem>>, vector<8x256xf32>
    %c0_61 = arith.constant 0 : index
    %c0_62 = arith.constant 0 : index
    %40 = vector.load %arg9[%c0_61, %c0_62] : memref<16x1280xf32, #tpu.memory_space<vmem>>, vector<8x256xf32>
    tpu.vector_store %arg9[%c0_61, %c0_62], %39 {strides = array<i32>} : memref<16x1280xf32, #tpu.memory_space<vmem>>, vector<8x256xf32>,
    %c1_63 = arith.constant 1 : index
    %c0_64 = arith.constant 0 : index
    %41 = vector.load %arg8[%c1_63, %c0_64] : memref<24x256xf32, #tpu.memory_space<vmem>>, vector<8x256xf32>
    %c0_65 = arith.constant 0 : index
    %c256 = arith.constant 256 : index
    %42 = vector.load %arg9[%c0_65, %c256] : memref<16x1280xf32, #tpu.memory_space<vmem>>, vector<8x256xf32>
    tpu.vector_store %arg9[%c0_65, %c256], %41 {strides = array<i32>} : memref<16x1280xf32, #tpu.memory_space<vmem>>, vector<8x256xf32>,
    %c2_66 = arith.constant 2 : index
    %c0_67 = arith.constant 0 : index
    %43 = vector.load %arg8[%c2_66, %c0_67] : memref<24x256xf32, #tpu.memory_space<vmem>>, vector<8x256xf32>
    %c0_68 = arith.constant 0 : index
    %c512 = arith.constant 512 : index
    %44 = vector.load %arg9[%c0_68, %c512] : memref<16x1280xf32, #tpu.memory_space<vmem>>, vector<8x256xf32>
    tpu.vector_store %arg9[%c0_68, %c512], %43 {strides = array<i32>} : memref<16x1280xf32, #tpu.memory_space<vmem>>, vector<8x256xf32>,
    %c3_69 = arith.constant 3 : index
    %c0_70 = arith.constant 0 : index
    %45 = vector.load %arg8[%c3_69, %c0_70] : memref<24x256xf32, #tpu.memory_space<vmem>>, vector<8x256xf32>
    %c0_71 = arith.constant 0 : index
    %c768 = arith.constant 768 : index
    %46 = vector.load %arg9[%c0_71, %c768] : memref<16x1280xf32, #tpu.memory_space<vmem>>, vector<8x256xf32>
    tpu.vector_store %arg9[%c0_71, %c768], %45 {strides = array<i32>} : memref<16x1280xf32, #tpu.memory_space<vmem>>, vector<8x256xf32>,
    %c4_72 = arith.constant 4 : index
    %c0_73 = arith.constant 0 : index
    %47 = vector.load %arg8[%c4_72, %c0_73] : memref<24x256xf32, #tpu.memory_space<vmem>>, vector<8x256xf32>
    %c0_74 = arith.constant 0 : index
    %c1024 = arith.constant 1024 : index
    %48 = vector.load %arg9[%c0_74, %c1024] : memref<16x1280xf32, #tpu.memory_space<vmem>>, vector<8x256xf32>
    tpu.vector_store %arg9[%c0_74, %c1024], %47 {strides = array<i32>} : memref<16x1280xf32, #tpu.memory_space<vmem>>, vector<8x256xf32>,
    %c12_75 = arith.constant 12 : index
    %c0_76 = arith.constant 0 : index
    %49 = vector.load %arg8[%c12_75, %c0_76] : memref<24x256xf32, #tpu.memory_space<vmem>>, vector<8x256xf32>
    %c8 = arith.constant 8 : index
    %c0_77 = arith.constant 0 : index
    %50 = vector.load %arg9[%c8, %c0_77] : memref<16x1280xf32, #tpu.memory_space<vmem>>, vector<8x256xf32>
    tpu.vector_store %arg9[%c8, %c0_77], %49 {strides = array<i32>} : memref<16x1280xf32, #tpu.memory_space<vmem>>, vector<8x256xf32>,
    %c13 = arith.constant 13 : index
    %c0_78 = arith.constant 0 : index
    %51 = vector.load %arg8[%c13, %c0_78] : memref<24x256xf32, #tpu.memory_space<vmem>>, vector<8x256xf32>
    %c8_79 = arith.constant 8 : index
    %c256_80 = arith.constant 256 : index
    %52 = vector.load %arg9[%c8_79, %c256_80] : memref<16x1280xf32, #tpu.memory_space<vmem>>, vector<8x256xf32>
    tpu.vector_store %arg9[%c8_79, %c256_80], %51 {strides = array<i32>} : memref<16x1280xf32, #tpu.memory_space<vmem>>, vector<8x256xf32>,
    %c14 = arith.constant 14 : index
    %c0_81 = arith.constant 0 : index
    %53 = vector.load %arg8[%c14, %c0_81] : memref<24x256xf32, #tpu.memory_space<vmem>>, vector<8x256xf32>
    %c8_82 = arith.constant 8 : index
    %c512_83 = arith.constant 512 : index
    %54 = vector.load %arg9[%c8_82, %c512_83] : memref<16x1280xf32, #tpu.memory_space<vmem>>, vector<8x256xf32>
    tpu.vector_store %arg9[%c8_82, %c512_83], %53 {strides = array<i32>} : memref<16x1280xf32, #tpu.memory_space<vmem>>, vector<8x256xf32>,
    %c15 = arith.constant 15 : index
    %c0_84 = arith.constant 0 : index
    %55 = vector.load %arg8[%c15, %c0_84] : memref<24x256xf32, #tpu.memory_space<vmem>>, vector<8x256xf32>
    %c8_85 = arith.constant 8 : index
    %c768_86 = arith.constant 768 : index
    %56 = vector.load %arg9[%c8_85, %c768_86] : memref<16x1280xf32, #tpu.memory_space<vmem>>, vector<8x256xf32>
    tpu.vector_store %arg9[%c8_85, %c768_86], %55 {strides = array<i32>} : memref<16x1280xf32, #tpu.memory_space<vmem>>, vector<8x256xf32>,
    %c16_87 = arith.constant 16 : index
    %c0_88 = arith.constant 0 : index
    %57 = vector.load %arg8[%c16_87, %c0_88] : memref<24x256xf32, #tpu.memory_space<vmem>>, vector<8x256xf32>
    %c8_89 = arith.constant 8 : index
    %c1024_90 = arith.constant 1024 : index
    %58 = vector.load %arg9[%c8_89, %c1024_90] : memref<16x1280xf32, #tpu.memory_space<vmem>>, vector<8x256xf32>
    tpu.vector_store %arg9[%c8_89, %c1024_90], %57 {strides = array<i32>} : memref<16x1280xf32, #tpu.memory_space<vmem>>, vector<8x256xf32>,
    %c0_91 = arith.constant 0 : index
    %c0_92 = arith.constant 0 : index
    %59 = vector.load %arg9[%c0_91, %c0_92] : memref<16x1280xf32, #tpu.memory_space<vmem>>, vector<16x1280xf32>
    %c0_93 = arith.constant 0 : index
    %c0_94 = arith.constant 0 : index
    %60 = vector.load %arg4[%c0_93, %c0_94] : memref<1280x160xf32, #tpu.memory_space<vmem>>, vector<1280x160xf32>
    %cst_95 = arith.constant dense<0.000000e+00> : vector<16x160xf32>
    %61 = tpu.matmul %59, %60, %cst_95 {dimension_numbers = #tpu.dot_dimension_numbers<[1], [0], [0], [1], [0, 0, 1, 1], [], []>} : vector<16x1280xf32>, vector<1280x160xf32>, vector<16x160xf32> -> vector<16x160xf32>
    %c0_96 = arith.constant 0 : index
    %c0_97 = arith.constant 0 : index
    %62 = vector.load %arg5[%c0_96, %c0_97] : memref<1x160xf32, #tpu.memory_space<vmem>>, vector<1x160xf32>
    %63 = vector.broadcast %62 : vector<1x160xf32> to vector<16x160xf32>
    %64 = arith.addf %61, %63 : vector<16x160xf32>
    %cst_98 = arith.constant 0.000000e+00 : f32
    %65 = vector.broadcast %cst_98 : f32 to vector<16x160xf32>
    %66 = arith.maximumf %64, %65 : vector<16x160xf32>
    %c0_99 = arith.constant 0 : index
    %c0_100 = arith.constant 0 : index
    %67 = vector.load %arg6[%c0_99, %c0_100] : memref<16x160xf32, #tpu.memory_space<vmem>>, vector<16x160xf32>
    tpu.vector_store %arg6[%c0_99, %c0_100], %66 {strides = array<i32>} : memref<16x160xf32, #tpu.memory_space<vmem>>, vector<16x160xf32>,
    return
  }
  func.func @transform_0(%arg0: i32) -> (i32, i32, i32, i32) {
    %c0_i32 = arith.constant 0 : i32
    %c0_i32_0 = arith.constant 0 : i32
    %c0_i32_1 = arith.constant 0 : i32
    %c0_i32_2 = arith.constant 0 : i32
    return %arg0, %c0_i32, %c0_i32_0, %c0_i32_1 : i32, i32, i32, i32
  }
  func.func @transform_1(%arg0: i32) -> (i32, i32) {
    %c0_i32 = arith.constant 0 : i32
    %c0_i32_0 = arith.constant 0 : i32
    %c0_i32_1 = arith.constant 0 : i32
    return %c0_i32, %c0_i32_0 : i32, i32
  }
  func.func @transform_2(%arg0: i32) -> (i32, i32) {
    %c0_i32 = arith.constant 0 : i32
    %c0_i32_0 = arith.constant 0 : i32
    %c0_i32_1 = arith.constant 0 : i32
    return %c0_i32, %c0_i32_0 : i32, i32
  }
  func.func @transform_3(%arg0: i32) -> (i32, i32) {
    %c0_i32 = arith.constant 0 : i32
    %c0_i32_0 = arith.constant 0 : i32
    %c0_i32_1 = arith.constant 0 : i32
    return %c0_i32, %c0_i32_0 : i32, i32
  }
  func.func @transform_4(%arg0: i32) -> (i32, i32) {
    %c0_i32 = arith.constant 0 : i32
    %c0_i32_0 = arith.constant 0 : i32
    %c0_i32_1 = arith.constant 0 : i32
    return %c0_i32, %c0_i32_0 : i32, i32
  }
  func.func @transform_5(%arg0: i32) -> (i32, i32) {
    %c0_i32 = arith.constant 0 : i32
    %c0_i32_0 = arith.constant 0 : i32
    return %arg0, %c0_i32 : i32, i32
  }
}

</mosaic_0001>

<llo_original>
// kernel: tpu_custom_call.1
$region0: #{tpu_custom_call.1}
  #allocation0 [shape = 'u32[]', space=smem, size = 0x4, offset = 0x4, fixed_abs, tag = 'smem constant byte address 0x4 - core index']
  #allocation1 [shape = 'u32[144,128]{1,0:T(1,128)}', space=vmem, size = 0x12000, scoped, tag = 'internal scratch']
  #allocation2 [shape = 'f32[24,80]{1,0:T(8,128)}', space=vmem, size = 0x3000, scoped, tag = 'scratch operand']
  #allocation3 [shape = 'f32[24,256]{1,0:T(8,128)}', space=vmem, size = 0x6000, scoped, tag = 'scratch operand']
  #allocation4 [shape = 'f32[16,1280]{1,0:T(8,128)}', space=vmem, size = 0x14000, scoped, tag = 'scratch operand']
  %s0 = inlined_call_operand.vmem [shape: f32[2,1,16,16], index: 0, kind: input, shape index: {}]
  %s1 = inlined_call_operand.vmem [shape: f32[80,256], index: 1, kind: input, shape index: {}]
  %s2 = inlined_call_operand.vmem [shape: f32[1,256], index: 2, kind: input, shape index: {}]
  %s3 = inlined_call_operand.vmem [shape: f32[1280,160], index: 3, kind: input, shape index: {}]
  %s4 = inlined_call_operand.vmem [shape: f32[1,160], index: 4, kind: input, shape index: {}]
  %s5 = inlined_call_operand.hbm [shape: f32[16,160], index: 5, kind: output, shape index: {}]
  %s6 = sld [smem:[#allocation0]]
  $region30: #{tpu_custom_call.1} parent=0
    _
  %s8 = ssub.s32 1, %s6
  %s9 = scalar_select 0, %s8, %s6
  $region1: #{tpu_custom_call.1} parent=0
    #allocation5 [shape = 'u8[16384]{0}', space=vmem, size = 0x4000, scoped, tag = 'output window, operand 0, single buffered']
    #allocation6 [shape = 's32[1]{0}', space=sflag, size = 0x4, scoped, tag = 'scoped memory for tpu_custom_call.1']
    %10 = vsyncpa [#allocation6], 0
    // Predicated region
    $region2: #{tpu_custom_call.1} parent=1 // pred_check
      _
    $region3: #{tpu_custom_call.1} parent=1 // pred_check_branch
      %12 = sbr.rel (0) target = $region5
    $region4: #{tpu_custom_call.1} parent=1 // pred_region
      _
    $region5: #{tpu_custom_call.1} parent=1 // pred_fallthru
      _
    // Predicated region
    $region6: #{tpu_custom_call.1} parent=1 // pred_check
      _
    $region7: #{tpu_custom_call.1} parent=1 // pred_check_branch
      %14 = sbr.rel (0) target = $region9
    $region8: #{tpu_custom_call.1} parent=1 // pred_region
      _
    $region9: #{tpu_custom_call.1} parent=1 // pred_fallthru
      _
    // Predicated region
    $region10: #{tpu_custom_call.1} parent=1 // pred_check
      _
    $region11: #{tpu_custom_call.1} parent=1 // pred_check_branch
      %16 = sbr.rel (0) target = $region13
    $region12: #{tpu_custom_call.1} parent=1 // pred_region
      _
    $region13: #{tpu_custom_call.1} parent=1 // pred_fallthru
      _
    // Predicated region
    $region14: #{tpu_custom_call.1} parent=1 // pred_check
      _
    $region15: #{tpu_custom_call.1} parent=1 // pred_check_branch
      %18 = sbr.rel (0) target = $region17
    $region16: #{tpu_custom_call.1} parent=1 // pred_region
      _
    $region17: #{tpu_custom_call.1} parent=1 // pred_fallthru
      _
    // Predicated region
    $region18: #{tpu_custom_call.1} parent=1 // pred_check
      _
    $region19: #{tpu_custom_call.1} parent=1 // pred_check_branch
      %20 = sbr.rel (0) target = $region21
    $region20: #{tpu_custom_call.1} parent=1 // pred_region
      _
    $region21: #{tpu_custom_call.1} parent=1 // pred_fallthru
      _
    %v21 = vld [vmem:[%s0] sm:$0xff]
    %v22 = vld [vmem:[%s0 + $0x8] sm:$0xf]
    %vm23 = vcmask 130048
    %24 = vst.msk [vmem:[#allocation2] sm:$0xff] %vm23, %v21
    %vm25 = vcmask 125952
    %26 = vst.msk [vmem:[#allocation2 + $0x8] sm:$0xf] %vm25, %v22
    %v27 = vld [vmem:[%s0 + $0x1] sm:$0xff]
    %v28 = vld [vmem:[%s0 + $0x9] sm:$0xf]
    %31 = vrot.lane.b32.xlu0 %v27, 16
    %v32 = vpop.permute.xlu0 %31
    %33 = vrot.lane.b32.xlu0 %v28, 16
    %v34 = vpop.permute.xlu0 %33
    %vm37 = vcmask 261248
    %38 = vst.msk [vmem:[#allocation2] sm:$0xff] %vm37, %v32
    %vm39 = vcmask 257152
    %40 = vst.msk [vmem:[#allocation2 + $0x8] sm:$0xf] %vm39, %v34
    %v41 = vld [vmem:[%s0 + $0x2] sm:$0xff]
    %v42 = vld [vmem:[%s0 + $0xa] sm:$0xf]
    %45 = vrot.lane.b32.xlu0 %v41, 32
    %v46 = vpop.permute.xlu0 %45
    %47 = vrot.lane.b32.xlu0 %v42, 32
    %v48 = vpop.permute.xlu0 %47
    %vm51 = vcmask 392448
    %52 = vst.msk [vmem:[#allocation2] sm:$0xff] %vm51, %v46
    %vm53 = vcmask 388352
    %54 = vst.msk [vmem:[#allocation2 + $0x8] sm:$0xf] %vm53, %v48
    %v55 = vld [vmem:[%s0 + $0x3] sm:$0xff]
    %v56 = vld [vmem:[%s0 + $0xb] sm:$0xf]
    %59 = vrot.lane.b32.xlu0 %v55, 48
    %v60 = vpop.permute.xlu0 %59
    %61 = vrot.lane.b32.xlu0 %v56, 48
    %v62 = vpop.permute.xlu0 %61
    %vm65 = vcmask 523648
    %66 = vst.msk [vmem:[#allocation2] sm:$0xff] %vm65, %v60
    %vm67 = vcmask 519552
    %68 = vst.msk [vmem:[#allocation2 + $0x8] sm:$0xf] %vm67, %v62
    %v69 = vld [vmem:[%s0 + $0x4] sm:$0xff]
    %v70 = vld [vmem:[%s0 + $0xc] sm:$0xf]
    %73 = vrot.lane.b32.xlu0 %v69, 64
    %v74 = vpop.permute.xlu0 %73
    %75 = vrot.lane.b32.xlu0 %v70, 64
    %v76 = vpop.permute.xlu0 %75
    %vm79 = vcmask 654848
    %80 = vst.msk [vmem:[#allocation2] sm:$0xff] %vm79, %v74
    %vm81 = vcmask 650752
    %82 = vst.msk [vmem:[#allocation2 + $0x8] sm:$0xf] %vm81, %v76
    %s83 = scalar_lea.vmem %s0, 16
    %v84 = vld [vmem:[%s83] sm:$0xff]
    %v85 = vld [vmem:[%s83 + $0x8] sm:$0xf]
    %86 = vst.msk [vmem:[#allocation2 + $0xc] sm:$0xff] %vm23, %v84
    %87 = vst.msk [vmem:[#allocation2 + $0x14] sm:$0xf] %vm25, %v85
    %v88 = vld [vmem:[%s83 + $0x1] sm:$0xff]
    %v89 = vld [vmem:[%s83 + $0x9] sm:$0xf]
    %92 = vrot.lane.b32.xlu0 %v88, 16
    %v93 = vpop.permute.xlu0 %92
    %94 = vrot.lane.b32.xlu0 %v89, 16
    %v95 = vpop.permute.xlu0 %94
    %98 = vst.msk [vmem:[#allocation2 + $0xc] sm:$0xff] %vm37, %v93
    %99 = vst.msk [vmem:[#allocation2 + $0x14] sm:$0xf] %vm39, %v95
    %v100 = vld [vmem:[%s83 + $0x2] sm:$0xff]
    %v101 = vld [vmem:[%s83 + $0xa] sm:$0xf]
    %104 = vrot.lane.b32.xlu0 %v100, 32
    %v105 = vpop.permute.xlu0 %104
    %106 = vrot.lane.b32.xlu0 %v101, 32
    %v107 = vpop.permute.xlu0 %106
    %110 = vst.msk [vmem:[#allocation2 + $0xc] sm:$0xff] %vm51, %v105
    %111 = vst.msk [vmem:[#allocation2 + $0x14] sm:$0xf] %vm53, %v107
    %v112 = vld [vmem:[%s83 + $0x3] sm:$0xff]
    %v113 = vld [vmem:[%s83 + $0xb] sm:$0xf]
    %116 = vrot.lane.b32.xlu0 %v112, 48
    %v117 = vpop.permute.xlu0 %116
    %118 = vrot.lane.b32.xlu0 %v113, 48
    %v119 = vpop.permute.xlu0 %118
    %122 = vst.msk [vmem:[#allocation2 + $0xc] sm:$0xff] %vm65, %v117
    %123 = vst.msk [vmem:[#allocation2 + $0x14] sm:$0xf] %vm67, %v119
    %v124 = vld [vmem:[%s83 + $0x4] sm:$0xff]
    %v125 = vld [vmem:[%s83 + $0xc] sm:$0xf]
    %128 = vrot.lane.b32.xlu0 %v124, 64
    %v129 = vpop.permute.xlu0 %128
    %130 = vrot.lane.b32.xlu0 %v125, 64
    %v131 = vpop.permute.xlu0 %130
    %134 = vst.msk [vmem:[#allocation2 + $0xc] sm:$0xff] %vm79, %v129
    %135 = vst.msk [vmem:[#allocation2 + $0x14] sm:$0xf] %vm81, %v131
    %v136 = vld [vmem:[#allocation2] sm:$0xff]
    %v137 = vld [vmem:[#allocation2 + $0x8] sm:$0xff]
    %v138 = vld [vmem:[#allocation2 + $0x10] sm:$0xff]
    %v139 = vld [vmem:[%s1] sm:$0xff]
    %v140 = vld [vmem:[%s1 + $0x8] sm:$0xff]
    %v141 = vld [vmem:[%s1 + $0x10] sm:$0xff]
    %v142 = vld [vmem:[%s1 + $0x18] sm:$0xff]
    %v143 = vld [vmem:[%s1 + $0x20] sm:$0xff]
    %v144 = vld [vmem:[%s1 + $0x28] sm:$0xff]
    %v145 = vld [vmem:[%s1 + $0x30] sm:$0xff]
    %v146 = vld [vmem:[%s1 + $0x38] sm:$0xff]
    %v147 = vld [vmem:[%s1 + $0x40] sm:$0xff]
    %v148 = vld [vmem:[%s1 + $0x48] sm:$0xff]
    %v149 = vld [vmem:[%s1 + $0x50] sm:$0xff]
    %v150 = vld [vmem:[%s1 + $0x58] sm:$0xff]
    %v151 = vld [vmem:[%s1 + $0x60] sm:$0xff]
    %v152 = vld [vmem:[%s1 + $0x68] sm:$0xff]
    %v153 = vld [vmem:[%s1 + $0x70] sm:$0xff]
    %v154 = vld [vmem:[%s1 + $0x78] sm:$0xff]
    %v155 = vld [vmem:[%s1 + $0x80] sm:$0xff]
    %v156 = vld [vmem:[%s1 + $0x88] sm:$0xff]
    %v157 = vld [vmem:[%s1 + $0x90] sm:$0xff]
    %v158 = vld [vmem:[%s1 + $0x98] sm:$0xff]
    %v159 = vld [vmem:[%s2] sm:$0x3]
    %v161 = vlaneseq
    %v162 = vshrl.u32 %v161, 7
    %v163 = vsub.s32 0, %v162
    %v164 = vrot.slane %v159, %v163
    %v165 = vlaneseq
    %v166 = vshrl.u32 %v165, 7
    %v167 = vsub.s32 1, %v166
    %v168 = vrot.slane %v159, %v167
    %vm171 = vcmask 654336
    %v173 = vsel %vm171, %v136, 0
    %v176 = vsel %vm171, %v137, 0
    %v179 = vsel %vm171, %v138, 0
    %181 = vmatprep.subr.mxu0 %v140
    %182 = vmatpush1.msra.mxu0 %v139
    %183 = vmatprep.subr.mxu0 %v142
    %184 = vmatpush1.msra.mxu0 %v141
    %185 = vmatprep.subr.mxu0 %v144
    %186 = vmatpush1.msra.mxu0 %v143
    %187 = vmatprep.subr.mxu0 %v146
    %188 = vmatpush1.msra.mxu0 %v145
    %189 = vmatprep.subr.mxu0 %v148
    %190 = vmatpush1.msra.mxu0 %v147
    %191 = vmatprep.subr.mxu0 %v150
    %192 = vmatpush1.msra.mxu0 %v149
    %193 = vmatprep.subr.mxu0 %v152
    %194 = vmatpush1.msra.mxu0 %v151
    %195 = vmatprep.subr.mxu0 %v154
    %196 = vmatpush1.msra.mxu0 %v153
    %197 = vmatprep.subr.mxu0 %v156
    %198 = vmatpush1.msra.mxu0 %v155
    %199 = vmatprep.subr.mxu0 %v158
    %200 = vmatpush1.msra.mxu0 %v157
    %201 = vmatprep.subr.mxu0 0.0
    %202 = vmatpush1.msra.mxu0 0.0
    %203 = vmatprep.subr.mxu0 0.0
    %204 = vmatpush1.msra.mxu0 0.0
    %205 = vmatprep.subr.mxu0 0.0
    %206 = vmatpush1.msra.mxu0 0.0
    %207 = vmatprep.subr.mxu0 0.0
    %208 = vmatpush1.msra.mxu0 0.0
    %209 = vmatprep.subr.mxu0 0.0
    %210 = vmatpush1.msra.mxu0 0.0
    %211 = vmatprep.subr.mxu0 0.0
    %212 = vmatpush1.msra.mxu0 0.0
    %213 = vmatprep.subr.mxu0 0.0
    %214 = vmatpush1.msra.mxu0 0.0
    %215 = vmatprep.subr.mxu0 0.0
    %216 = vmatpush1.msra.mxu0 0.0
    %217 = vmatprep.subr.mxu0 0.0
    %218 = vmatpush1.msra.mxu0 0.0
    %219 = vmatprep.subr.mxu0 0.0
    %220 = vmatpush1.msra.mxu0 0.0
    %221 = vmatprep.subr.mxu0 0.0
    %222 = vmatpush1.msra.mxu0 0.0
    %223 = vmatprep.subr.mxu0 0.0
    %224 = vmatpush1.msra.mxu0 0.0
    %225 = vmatprep.subr.mxu0 0.0
    %226 = vmatpush1.msra.mxu0 0.0
    %227 = vmatprep.subr.mxu0 0.0
    %228 = vmatpush1.msra.mxu0 0.0
    %229 = vmatprep.subr.mxu0 0.0
    %230 = vmatpush1.msra.mxu0 0.0
    %231 = vmatprep.subr.mxu0 0.0
    %232 = vmatpush1.msra.mxu0 0.0
    %233 = vmatprep.subr.mxu0 0.0
    %234 = vmatpush1.msra.mxu0 0.0
    %235 = vmatprep.subr.mxu0 0.0
    %236 = vmatpush1.msra.mxu0 0.0
    %237 = vmatprep.subr.mxu0 0.0
    %238 = vmatpush1.msra.mxu0 0.0
    %239 = vmatprep.subr.mxu0 0.0
    %240 = vmatpush1.msra.mxu0 0.0
    %241 = vmatprep.subr.mxu0 0.0
    %242 = vmatpush1.msra.mxu0 0.0
    %243 = vmatprep.subr.mxu0 0.0
    %244 = vmatpush1.msra.mxu0 0.0
    %245 = vmatprep.mubr.f32.mxu0 0.0
    %246 = vmatmul.mubr.f32.gmra.mrb[0].mxu0 %v173
    %v247 = vpop.f32.mrb[0].mxu0
    %v248 = vadd.f32 %v164, %v247
    %v249 = vpop.f32.mrb[0].mxu0
    %v250 = vadd.f32 %v168, %v249
    %251 = vmatprep.mubr.f32.mxu0 0.0
    %252 = vmatmul.mubr.f32.gmra.mrb[0].mxu0 %v176
    %v253 = vpop.f32.mrb[0].mxu0
    %v254 = vadd.f32 %v164, %v253
    %v255 = vpop.f32.mrb[0].mxu0
    %v256 = vadd.f32 %v168, %v255
    %257 = vmatprep.mubr.f32.mxu0 0.0
    %258 = vmatmul.mubr.f32.gmra.mrb[0].mxu0 %v179
    %v259 = vpop.f32.mrb[0].mxu0
    %v260 = vadd.f32 %v164, %v259
    %v261 = vpop.f32.mrb[0].mxu0
    %v262 = vadd.f32 %v168, %v261
    %263 = vdwg.mxu0
    %v264 = vmax.f32 %v248, 0.0
    %v265 = vmax.f32 %v250, 0.0
    %v266 = vmax.f32 %v254, 0.0
    %v267 = vmax.f32 %v256, 0.0
    %v268 = vmax.f32 %v260, 0.0
    %v269 = vmax.f32 %v262, 0.0
    %270 = vst [vmem:[#allocation3] sm:$0xff] %v264
    %271 = vst [vmem:[#allocation3 + $0x8] sm:$0xff] %v265
    %272 = vst [vmem:[#allocation3 + $0x10] sm:$0xff] %v266
    %273 = vst [vmem:[#allocation3 + $0x18] sm:$0xff] %v267
    %274 = vst [vmem:[#allocation3 + $0x20] sm:$0xff] %v268
    %275 = vst [vmem:[#allocation3 + $0x28] sm:$0xff] %v269
    %v276 = vld [vmem:[#allocation3] sm:$0xff]
    %v277 = vld [vmem:[#allocation3 + $0x8] sm:$0xff]
    %278 = vst [vmem:[#allocation4] sm:$0xff] %v276
    %279 = vst [vmem:[#allocation4 + $0x8] sm:$0xff] %v277
    %v280 = vld [vmem:[#allocation3] sm:$0xfe]
    %v281 = vld [vmem:[#allocation3 + $0x8] sm:$0xfe]
    %v282 = vld [vmem:[#allocation3 + $0x10] sm:$0x1]
    %v283 = vld [vmem:[#allocation3 + $0x18] sm:$0x1]
    %vm288 = vcmask 1046528
    %v289 = vrot.slane %v280, 1
    %v290 = vrot.slane %v282, 1
    %v291 = vsel %vm288, %v289, %v290
    %v292 = vrot.slane %v281, 1
    %v293 = vrot.slane %v283, 1
    %v294 = vsel %vm288, %v292, %v293
    %297 = vst [vmem:[#allocation4 + $0x10] sm:$0xff] %v291
    %298 = vst [vmem:[#allocation4 + $0x18] sm:$0xff] %v294
    %v299 = vld [vmem:[#allocation3] sm:$0xfc]
    %v300 = vld [vmem:[#allocation3 + $0x8] sm:$0xfc]
    %v301 = vld [vmem:[#allocation3 + $0x10] sm:$0x3]
    %v302 = vld [vmem:[#allocation3 + $0x18] sm:$0x3]
    %vm307 = vcmask 1045504
    %v308 = vrot.slane %v299, 2
    %v309 = vrot.slane %v301, 2
    %v310 = vsel %vm307, %v308, %v309
    %v311 = vrot.slane %v300, 2
    %v312 = vrot.slane %v302, 2
    %v313 = vsel %vm307, %v311, %v312
    %316 = vst [vmem:[#allocation4 + $0x20] sm:$0xff] %v310
    %317 = vst [vmem:[#allocation4 + $0x28] sm:$0xff] %v313
    %v318 = vld [vmem:[#allocation3] sm:$0xf8]
    %v319 = vld [vmem:[#allocation3 + $0x8] sm:$0xf8]
    %v320 = vld [vmem:[#allocation3 + $0x10] sm:$0x7]
    %v321 = vld [vmem:[#allocation3 + $0x18] sm:$0x7]
    %vm326 = vcmask 1044480
    %v327 = vrot.slane %v318, 3
    %v328 = vrot.slane %v320, 3
    %v329 = vsel %vm326, %v327, %v328
    %v330 = vrot.slane %v319, 3
    %v331 = vrot.slane %v321, 3
    %v332 = vsel %vm326, %v330, %v331
    %335 = vst [vmem:[#allocation4 + $0x30] sm:$0xff] %v329
    %336 = vst [vmem:[#allocation4 + $0x38] sm:$0xff] %v332
    %v337 = vld [vmem:[#allocation3] sm:$0xf0]
    %v338 = vld [vmem:[#allocation3 + $0x8] sm:$0xf0]
    %v339 = vld [vmem:[#allocation3 + $0x10] sm:$0xf]
    %v340 = vld [vmem:[#allocation3 + $0x18] sm:$0xf]
    %vm345 = vcmask 1043456
    %v346 = vrot.slane %v337, 4
    %v347 = vrot.slane %v339, 4
    %v348 = vsel %vm345, %v346, %v347
    %v349 = vrot.slane %v338, 4
    %v350 = vrot.slane %v340, 4
    %v351 = vsel %vm345, %v349, %v350
    %354 = vst [vmem:[#allocation4 + $0x40] sm:$0xff] %v348
    %355 = vst [vmem:[#allocation4 + $0x48] sm:$0xff] %v351
    %v356 = vld [vmem:[#allocation3 + $0x10] sm:$0xf0]
    %v357 = vld [vmem:[#allocation3 + $0x18] sm:$0xf0]
    %v358 = vld [vmem:[#allocation3 + $0x20] sm:$0xf]
    %v359 = vld [vmem:[#allocation3 + $0x28] sm:$0xf]
    %v364 = vrot.slane %v356, 4
    %v365 = vrot.slane %v358, 4
    %v366 = vsel %vm345, %v364, %v365
    %v367 = vrot.slane %v357, 4
    %v368 = vrot.slane %v359, 4
    %v369 = vsel %vm345, %v367, %v368
    %372 = vst [vmem:[#allocation4 + $0x50] sm:$0xff] %v366
    %373 = vst [vmem:[#allocation4 + $0x58] sm:$0xff] %v369
    %v374 = vld [vmem:[#allocation3 + $0x10] sm:$0xe0]
    %v375 = vld [vmem:[#allocation3 + $0x18] sm:$0xe0]
    %v376 = vld [vmem:[#allocation3 + $0x20] sm:$0x1f]
    %v377 = vld [vmem:[#allocation3 + $0x28] sm:$0x1f]
    %vm382 = vcmask 1042432
    %v383 = vrot.slane %v374, 5
    %v384 = vrot.slane %v376, 5
    %v385 = vsel %vm382, %v383, %v384
    %v386 = vrot.slane %v375, 5
    %v387 = vrot.slane %v377, 5
    %v388 = vsel %vm382, %v386, %v387
    %391 = vst [vmem:[#allocation4 + $0x60] sm:$0xff] %v385
    %392 = vst [vmem:[#allocation4 + $0x68] sm:$0xff] %v388
    %v393 = vld [vmem:[#allocation3 + $0x10] sm:$0xc0]
    %v394 = vld [vmem:[#allocation3 + $0x18] sm:$0xc0]
    %v395 = vld [vmem:[#allocation3 + $0x20] sm:$0x3f]
    %v396 = vld [vmem:[#allocation3 + $0x28] sm:$0x3f]
    %vm401 = vcmask 1041408
    %v402 = vrot.slane %v393, 6
    %v403 = vrot.slane %v395, 6
    %v404 = vsel %vm401, %v402, %v403
    %v405 = vrot.slane %v394, 6
    %v406 = vrot.slane %v396, 6
    %v407 = vsel %vm401, %v405, %v406
    %410 = vst [vmem:[#allocation4 + $0x70] sm:$0xff] %v404
    %411 = vst [vmem:[#allocation4 + $0x78] sm:$0xff] %v407
    %v412 = vld [vmem:[#allocation3 + $0x10] sm:$0x80]
    %v413 = vld [vmem:[#allocation3 + $0x18] sm:$0x80]
    %v414 = vld [vmem:[#allocation3 + $0x20] sm:$0x7f]
    %v415 = vld [vmem:[#allocation3 + $0x28] sm:$0x7f]
    %vm420 = vcmask 1040384
    %v421 = vrot.slane %v412, 7
    %v422 = vrot.slane %v414, 7
    %v423 = vsel %vm420, %v421, %v422
    %v424 = vrot.slane %v413, 7
    %v425 = vrot.slane %v415, 7
    %v426 = vsel %vm420, %v424, %v425
    %429 = vst [vmem:[#allocation4 + $0x80] sm:$0xff] %v423
    %430 = vst [vmem:[#allocation4 + $0x88] sm:$0xff] %v426
    %v431 = vld [vmem:[#allocation3 + $0x20] sm:$0xff]
    %v432 = vld [vmem:[#allocation3 + $0x28] sm:$0xff]
    %433 = vst [vmem:[#allocation4 + $0x90] sm:$0xff] %v431
    %434 = vst [vmem:[#allocation4 + $0x98] sm:$0xff] %v432
    %v435 = vld [vmem:[#allocation4] sm:$0xff]
    %v436 = vld [vmem:[#allocation4 + $0x8] sm:$0xff]
    %v437 = vld [vmem:[#allocation4 + $0x10] sm:$0xff]
    %v438 = vld [vmem:[#allocation4 + $0x18] sm:$0xff]
    %v439 = vld [vmem:[#allocation4 + $0x20] sm:$0xff]
    %v440 = vld [vmem:[#allocation4 + $0x28] sm:$0xff]
    %v441 = vld [vmem:[#allocation4 + $0x30] sm:$0xff]
    %v442 = vld [vmem:[#allocation4 + $0x38] sm:$0xff]
    %v443 = vld [vmem:[#allocation4 + $0x40] sm:$0xff]
    %v444 = vld [vmem:[#allocation4 + $0x48] sm:$0xff]
    %v445 = vld [vmem:[#allocation4 + $0x50] sm:$0xff]
    %v446 = vld [vmem:[#allocation4 + $0x58] sm:$0xff]
    %v447 = vld [vmem:[#allocation4 + $0x60] sm:$0xff]
    %v448 = vld [vmem:[#allocation4 + $0x68] sm:$0xff]
    %v449 = vld [vmem:[#allocation4 + $0x70] sm:$0xff]
    %v450 = vld [vmem:[#allocation4 + $0x78] sm:$0xff]
    %v451 = vld [vmem:[#allocation4 + $0x80] sm:$0xff]
    %v452 = vld [vmem:[#allocation4 + $0x88] sm:$0xff]
    %v453 = vld [vmem:[#allocation4 + $0x90] sm:$0xff]
    %v454 = vld [vmem:[#allocation4 + $0x98] sm:$0xff]
    %v455 = vld [vmem:[%s3] sm:$0xff]
    %v456 = vld [vmem:[%s3 + $0x8] sm:$0xff]
    %v457 = vld [vmem:[%s3 + $0x10] sm:$0xff]
    %v458 = vld [vmem:[%s3 + $0x18] sm:$0xff]
    %v459 = vld [vmem:[%s3 + $0x20] sm:$0xff]
    %v460 = vld [vmem:[%s3 + $0x28] sm:$0xff]
    %v461 = vld [vmem:[%s3 + $0x30] sm:$0xff]
    %v462 = vld [vmem:[%s3 + $0x38] sm:$0xff]
    %v463 = vld [vmem:[%s3 + $0x40] sm:$0xff]
    %v464 = vld [vmem:[%s3 + $0x48] sm:$0xff]
    %v465 = vld [vmem:[%s3 + $0x50] sm:$0xff]
    %v466 = vld [vmem:[%s3 + $0x58] sm:$0xff]
    %v467 = vld [vmem:[%s3 + $0x60] sm:$0xff]
    %v468 = vld [vmem:[%s3 + $0x68] sm:$0xff]
    %v469 = vld [vmem:[%s3 + $0x70] sm:$0xff]
    %v470 = vld [vmem:[%s3 + $0x78] sm:$0xff]
    %v471 = vld [vmem:[%s3 + $0x80] sm:$0xff]
    %v472 = vld [vmem:[%s3 + $0x88] sm:$0xff]
    %v473 = vld [vmem:[%s3 + $0x90] sm:$0xff]
    %v474 = vld [vmem:[%s3 + $0x98] sm:$0xff]
    %v475 = vld [vmem:[%s3 + $0xa0] sm:$0xff]
    %v476 = vld [vmem:[%s3 + $0xa8] sm:$0xff]
    %v477 = vld [vmem:[%s3 + $0xb0] sm:$0xff]
    %v478 = vld [vmem:[%s3 + $0xb8] sm:$0xff]
    %v479 = vld [vmem:[%s3 + $0xc0] sm:$0xff]
    %v480 = vld [vmem:[%s3 + $0xc8] sm:$0xff]
    %v481 = vld [vmem:[%s3 + $0xd0] sm:$0xff]
    %v482 = vld [vmem:[%s3 + $0xd8] sm:$0xff]
    %v483 = vld [vmem:[%s3 + $0xe0] sm:$0xff]
    %v484 = vld [vmem:[%s3 + $0xe8] sm:$0xff]
    %v485 = vld [vmem:[%s3 + $0xf0] sm:$0xff]
    %v486 = vld [vmem:[%s3 + $0xf8] sm:$0xff]
    %v487 = vld [vmem:[%s3 + $0x100] sm:$0xff]
    %v488 = vld [vmem:[%s3 + $0x108] sm:$0xff]
    %v489 = vld [vmem:[%s3 + $0x110] sm:$0xff]
    %v490 = vld [vmem:[%s3 + $0x118] sm:$0xff]
    %v491 = vld [vmem:[%s3 + $0x120] sm:$0xff]
    %v492 = vld [vmem:[%s3 + $0x128] sm:$0xff]
    %v493 = vld [vmem:[%s3 + $0x130] sm:$0xff]
    %v494 = vld [vmem:[%s3 + $0x138] sm:$0xff]
    %v495 = vld [vmem:[%s3 + $0x140] sm:$0xff]
    %v496 = vld [vmem:[%s3 + $0x148] sm:$0xff]
    %v497 = vld [vmem:[%s3 + $0x150] sm:$0xff]
    %v498 = vld [vmem:[%s3 + $0x158] sm:$0xff]
    %v499 = vld [vmem:[%s3 + $0x160] sm:$0xff]
    %v500 = vld [vmem:[%s3 + $0x168] sm:$0xff]
    %v501 = vld [vmem:[%s3 + $0x170] sm:$0xff]
    %v502 = vld [vmem:[%s3 + $0x178] sm:$0xff]
    %v503 = vld [vmem:[%s3 + $0x180] sm:$0xff]
    %v504 = vld [vmem:[%s3 + $0x188] sm:$0xff]
    %v505 = vld [vmem:[%s3 + $0x190] sm:$0xff]
    %v506 = vld [vmem:[%s3 + $0x198] sm:$0xff]
    %v507 = vld [vmem:[%s3 + $0x1a0] sm:$0xff]
    %v508 = vld [vmem:[%s3 + $0x1a8] sm:$0xff]
    %v509 = vld [vmem:[%s3 + $0x1b0] sm:$0xff]
    %v510 = vld [vmem:[%s3 + $0x1b8] sm:$0xff]
    %v511 = vld [vmem:[%s3 + $0x1c0] sm:$0xff]
    %v512 = vld [vmem:[%s3 + $0x1c8] sm:$0xff]
    %v513 = vld [vmem:[%s3 + $0x1d0] sm:$0xff]
    %v514 = vld [vmem:[%s3 + $0x1d8] sm:$0xff]
    %v515 = vld [vmem:[%s3 + $0x1e0] sm:$0xff]
    %v516 = vld [vmem:[%s3 + $0x1e8] sm:$0xff]
    %v517 = vld [vmem:[%s3 + $0x1f0] sm:$0xff]
    %v518 = vld [vmem:[%s3 + $0x1f8] sm:$0xff]
    %v519 = vld [vmem:[%s3 + $0x200] sm:$0xff]
    %v520 = vld [vmem:[%s3 + $0x208] sm:$0xff]
    %v521 = vld [vmem:[%s3 + $0x210] sm:$0xff]
    %v522 = vld [vmem:[%s3 + $0x218] sm:$0xff]
    %v523 = vld [vmem:[%s3 + $0x220] sm:$0xff]
    %v524 = vld [vmem:[%s3 + $0x228] sm:$0xff]
    %v525 = vld [vmem:[%s3 + $0x230] sm:$0xff]
    %v526 = vld [vmem:[%s3 + $0x238] sm:$0xff]
    %v527 = vld [vmem:[%s3 + $0x240] sm:$0xff]
    %v528 = vld [vmem:[%s3 + $0x248] sm:$0xff]
    %v529 = vld [vmem:[%s3 + $0x250] sm:$0xff]
    %v530 = vld [vmem:[%s3 + $0x258] sm:$0xff]
    %v531 = vld [vmem:[%s3 + $0x260] sm:$0xff]
    %v532 = vld [vmem:[%s3 + $0x268] sm:$0xff]
    %v533 = vld [vmem:[%s3 + $0x270] sm:$0xff]
    %v534 = vld [vmem:[%s3 + $0x278] sm:$0xff]
    %v535 = vld [vmem:[%s3 + $0x280] sm:$0xff]
    %v536 = vld [vmem:[%s3 + $0x288] sm:$0xff]
    %v537 = vld [vmem:[%s3 + $0x290] sm:$0xff]
    %v538 = vld [vmem:[%s3 + $0x298] sm:$0xff]
    %v539 = vld [vmem:[%s3 + $0x2a0] sm:$0xff]
    %v540 = vld [vmem:[%s3 + $0x2a8] sm:$0xff]
    %v541 = vld [vmem:[%s3 + $0x2b0] sm:$0xff]
    %v542 = vld [vmem:[%s3 + $0x2b8] sm:$0xff]
    %v543 = vld [vmem:[%s3 + $0x2c0] sm:$0xff]
    %v544 = vld [vmem:[%s3 + $0x2c8] sm:$0xff]
    %v545 = vld [vmem:[%s3 + $0x2d0] sm:$0xff]
    %v546 = vld [vmem:[%s3 + $0x2d8] sm:$0xff]
    %v547 = vld [vmem:[%s3 + $0x2e0] sm:$0xff]
    %v548 = vld [vmem:[%s3 + $0x2e8] sm:$0xff]
    %v549 = vld [vmem:[%s3 + $0x2f0] sm:$0xff]
    %v550 = vld [vmem:[%s3 + $0x2f8] sm:$0xff]
    %v551 = vld [vmem:[%s3 + $0x300] sm:$0xff]
    %v552 = vld [vmem:[%s3 + $0x308] sm:$0xff]
    %v553 = vld [vmem:[%s3 + $0x310] sm:$0xff]
    %v554 = vld [vmem:[%s3 + $0x318] sm:$0xff]
    %v555 = vld [vmem:[%s3 + $0x320] sm:$0xff]
    %v556 = vld [vmem:[%s3 + $0x328] sm:$0xff]
    %v557 = vld [vmem:[%s3 + $0x330] sm:$0xff]
    %v558 = vld [vmem:[%s3 + $0x338] sm:$0xff]
    %v559 = vld [vmem:[%s3 + $0x340] sm:$0xff]
    %v560 = vld [vmem:[%s3 + $0x348] sm:$0xff]
    %v561 = vld [vmem:[%s3 + $0x350] sm:$0xff]
    %v562 = vld [vmem:[%s3 + $0x358] sm:$0xff]
    %v563 = vld [vmem:[%s3 + $0x360] sm:$0xff]
    %v564 = vld [vmem:[%s3 + $0x368] sm:$0xff]
    %v565 = vld [vmem:[%s3 + $0x370] sm:$0xff]
    %v566 = vld [vmem:[%s3 + $0x378] sm:$0xff]
    %v567 = vld [vmem:[%s3 + $0x380] sm:$0xff]
    %v568 = vld [vmem:[%s3 + $0x388] sm:$0xff]
    %v569 = vld [vmem:[%s3 + $0x390] sm:$0xff]
    %v570 = vld [vmem:[%s3 + $0x398] sm:$0xff]
    %v571 = vld [vmem:[%s3 + $0x3a0] sm:$0xff]
    %v572 = vld [vmem:[%s3 + $0x3a8] sm:$0xff]
    %v573 = vld [vmem:[%s3 + $0x3b0] sm:$0xff]
    %v574 = vld [vmem:[%s3 + $0x3b8] sm:$0xff]
    %v575 = vld [vmem:[%s3 + $0x3c0] sm:$0xff]
    %v576 = vld [vmem:[%s3 + $0x3c8] sm:$0xff]
    %v577 = vld [vmem:[%s3 + $0x3d0] sm:$0xff]
    %v578 = vld [vmem:[%s3 + $0x3d8] sm:$0xff]
    %v579 = vld [vmem:[%s3 + $0x3e0] sm:$0xff]
    %v580 = vld [vmem:[%s3 + $0x3e8] sm:$0xff]
    %v581 = vld [vmem:[%s3 + $0x3f0] sm:$0xff]
    %v582 = vld [vmem:[%s3 + $0x3f8] sm:$0xff]
    %v583 = vld [vmem:[%s3 + $0x400] sm:$0xff]
    %v584 = vld [vmem:[%s3 + $0x408] sm:$0xff]
    %v585 = vld [vmem:[%s3 + $0x410] sm:$0xff]
    %v586 = vld [vmem:[%s3 + $0x418] sm:$0xff]
    %v587 = vld [vmem:[%s3 + $0x420] sm:$0xff]
    %v588 = vld [vmem:[%s3 + $0x428] sm:$0xff]
    %v589 = vld [vmem:[%s3 + $0x430] sm:$0xff]
    %v590 = vld [vmem:[%s3 + $0x438] sm:$0xff]
    %v591 = vld [vmem:[%s3 + $0x440] sm:$0xff]
    %v592 = vld [vmem:[%s3 + $0x448] sm:$0xff]
    %v593 = vld [vmem:[%s3 + $0x450] sm:$0xff]
    %v594 = vld [vmem:[%s3 + $0x458] sm:$0xff]
    %v595 = vld [vmem:[%s3 + $0x460] sm:$0xff]
    %v596 = vld [vmem:[%s3 + $0x468] sm:$0xff]
    %v597 = vld [vmem:[%s3 + $0x470] sm:$0xff]
    %v598 = vld [vmem:[%s3 + $0x478] sm:$0xff]
    %v599 = vld [vmem:[%s3 + $0x480] sm:$0xff]
    %v600 = vld [vmem:[%s3 + $0x488] sm:$0xff]
    %v601 = vld [vmem:[%s3 + $0x490] sm:$0xff]
    %v602 = vld [vmem:[%s3 + $0x498] sm:$0xff]
    %v603 = vld [vmem:[%s3 + $0x4a0] sm:$0xff]
    %v604 = vld [vmem:[%s3 + $0x4a8] sm:$0xff]
    %v605 = vld [vmem:[%s3 + $0x4b0] sm:$0xff]
    %v606 = vld [vmem:[%s3 + $0x4b8] sm:$0xff]
    %v607 = vld [vmem:[%s3 + $0x4c0] sm:$0xff]
    %v608 = vld [vmem:[%s3 + $0x4c8] sm:$0xff]
    %v609 = vld [vmem:[%s3 + $0x4d0] sm:$0xff]
    %v610 = vld [vmem:[%s3 + $0x4d8] sm:$0xff]
    %v611 = vld [vmem:[%s3 + $0x4e0] sm:$0xff]
    %v612 = vld [vmem:[%s3 + $0x4e8] sm:$0xff]
    %v613 = vld [vmem:[%s3 + $0x4f0] sm:$0xff]
    %v614 = vld [vmem:[%s3 + $0x4f8] sm:$0xff]
    %v615 = vld [vmem:[%s3 + $0x500] sm:$0xff]
    %v616 = vld [vmem:[%s3 + $0x508] sm:$0xff]
    %v617 = vld [vmem:[%s3 + $0x510] sm:$0xff]
    %v618 = vld [vmem:[%s3 + $0x518] sm:$0xff]
    %v619 = vld [vmem:[%s3 + $0x520] sm:$0xff]
    %v620 = vld [vmem:[%s3 + $0x528] sm:$0xff]
    %v621 = vld [vmem:[%s3 + $0x530] sm:$0xff]
    %v622 = vld [vmem:[%s3 + $0x538] sm:$0xff]
    %v623 = vld [vmem:[%s3 + $0x540] sm:$0xff]
    %v624 = vld [vmem:[%s3 + $0x548] sm:$0xff]
    %v625 = vld [vmem:[%s3 + $0x550] sm:$0xff]
    %v626 = vld [vmem:[%s3 + $0x558] sm:$0xff]
    %v627 = vld [vmem:[%s3 + $0x560] sm:$0xff]
    %v628 = vld [vmem:[%s3 + $0x568] sm:$0xff]
    %v629 = vld [vmem:[%s3 + $0x570] sm:$0xff]
    %v630 = vld [vmem:[%s3 + $0x578] sm:$0xff]
    %v631 = vld [vmem:[%s3 + $0x580] sm:$0xff]
    %v632 = vld [vmem:[%s3 + $0x588] sm:$0xff]
    %v633 = vld [vmem:[%s3 + $0x590] sm:$0xff]
    %v634 = vld [vmem:[%s3 + $0x598] sm:$0xff]
    %v635 = vld [vmem:[%s3 + $0x5a0] sm:$0xff]
    %v636 = vld [vmem:[%s3 + $0x5a8] sm:$0xff]
    %v637 = vld [vmem:[%s3 + $0x5b0] sm:$0xff]
    %v638 = vld [vmem:[%s3 + $0x5b8] sm:$0xff]
    %v639 = vld [vmem:[%s3 + $0x5c0] sm:$0xff]
    %v640 = vld [vmem:[%s3 + $0x5c8] sm:$0xff]
    %v641 = vld [vmem:[%s3 + $0x5d0] sm:$0xff]
    %v642 = vld [vmem:[%s3 + $0x5d8] sm:$0xff]
    %v643 = vld [vmem:[%s3 + $0x5e0] sm:$0xff]
    %v644 = vld [vmem:[%s3 + $0x5e8] sm:$0xff]
    %v645 = vld [vmem:[%s3 + $0x5f0] sm:$0xff]
    %v646 = vld [vmem:[%s3 + $0x5f8] sm:$0xff]
    %v647 = vld [vmem:[%s3 + $0x600] sm:$0xff]
    %v648 = vld [vmem:[%s3 + $0x608] sm:$0xff]
    %v649 = vld [vmem:[%s3 + $0x610] sm:$0xff]
    %v650 = vld [vmem:[%s3 + $0x618] sm:$0xff]
    %v651 = vld [vmem:[%s3 + $0x620] sm:$0xff]
    %v652 = vld [vmem:[%s3 + $0x628] sm:$0xff]
    %v653 = vld [vmem:[%s3 + $0x630] sm:$0xff]
    %v654 = vld [vmem:[%s3 + $0x638] sm:$0xff]
    %v655 = vld [vmem:[%s3 + $0x640] sm:$0xff]
    %v656 = vld [vmem:[%s3 + $0x648] sm:$0xff]
    %v657 = vld [vmem:[%s3 + $0x650] sm:$0xff]
    %v658 = vld [vmem:[%s3 + $0x658] sm:$0xff]
    %v659 = vld [vmem:[%s3 + $0x660] sm:$0xff]
    %v660 = vld [vmem:[%s3 + $0x668] sm:$0xff]
    %v661 = vld [vmem:[%s3 + $0x670] sm:$0xff]
    %v662 = vld [vmem:[%s3 + $0x678] sm:$0xff]
    %v663 = vld [vmem:[%s3 + $0x680] sm:$0xff]
    %v664 = vld [vmem:[%s3 + $0x688] sm:$0xff]
    %v665 = vld [vmem:[%s3 + $0x690] sm:$0xff]
    %v666 = vld [vmem:[%s3 + $0x698] sm:$0xff]
    %v667 = vld [vmem:[%s3 + $0x6a0] sm:$0xff]
    %v668 = vld [vmem:[%s3 + $0x6a8] sm:$0xff]
    %v669 = vld [vmem:[%s3 + $0x6b0] sm:$0xff]
    %v670 = vld [vmem:[%s3 + $0x6b8] sm:$0xff]
    %v671 = vld [vmem:[%s3 + $0x6c0] sm:$0xff]
    %v672 = vld [vmem:[%s3 + $0x6c8] sm:$0xff]
    %v673 = vld [vmem:[%s3 + $0x6d0] sm:$0xff]
    %v674 = vld [vmem:[%s3 + $0x6d8] sm:$0xff]
    %v675 = vld [vmem:[%s3 + $0x6e0] sm:$0xff]
    %v676 = vld [vmem:[%s3 + $0x6e8] sm:$0xff]
    %v677 = vld [vmem:[%s3 + $0x6f0] sm:$0xff]
    %v678 = vld [vmem:[%s3 + $0x6f8] sm:$0xff]
    %v679 = vld [vmem:[%s3 + $0x700] sm:$0xff]
    %v680 = vld [vmem:[%s3 + $0x708] sm:$0xff]
    %v681 = vld [vmem:[%s3 + $0x710] sm:$0xff]
    %v682 = vld [vmem:[%s3 + $0x718] sm:$0xff]
    %v683 = vld [vmem:[%s3 + $0x720] sm:$0xff]
    %v684 = vld [vmem:[%s3 + $0x728] sm:$0xff]
    %v685 = vld [vmem:[%s3 + $0x730] sm:$0xff]
    %v686 = vld [vmem:[%s3 + $0x738] sm:$0xff]
    %v687 = vld [vmem:[%s3 + $0x740] sm:$0xff]
    %v688 = vld [vmem:[%s3 + $0x748] sm:$0xff]
    %v689 = vld [vmem:[%s3 + $0x750] sm:$0xff]
    %v690 = vld [vmem:[%s3 + $0x758] sm:$0xff]
    %v691 = vld [vmem:[%s3 + $0x760] sm:$0xff]
    %v692 = vld [vmem:[%s3 + $0x768] sm:$0xff]
    %v693 = vld [vmem:[%s3 + $0x770] sm:$0xff]
    %v694 = vld [vmem:[%s3 + $0x778] sm:$0xff]
    %v695 = vld [vmem:[%s3 + $0x780] sm:$0xff]
    %v696 = vld [vmem:[%s3 + $0x788] sm:$0xff]
    %v697 = vld [vmem:[%s3 + $0x790] sm:$0xff]
    %v698 = vld [vmem:[%s3 + $0x798] sm:$0xff]
    %v699 = vld [vmem:[%s3 + $0x7a0] sm:$0xff]
    %v700 = vld [vmem:[%s3 + $0x7a8] sm:$0xff]
    %v701 = vld [vmem:[%s3 + $0x7b0] sm:$0xff]
    %v702 = vld [vmem:[%s3 + $0x7b8] sm:$0xff]
    %v703 = vld [vmem:[%s3 + $0x7c0] sm:$0xff]
    %v704 = vld [vmem:[%s3 + $0x7c8] sm:$0xff]
    %v705 = vld [vmem:[%s3 + $0x7d0] sm:$0xff]
    %v706 = vld [vmem:[%s3 + $0x7d8] sm:$0xff]
    %v707 = vld [vmem:[%s3 + $0x7e0] sm:$0xff]
    %v708 = vld [vmem:[%s3 + $0x7e8] sm:$0xff]
    %v709 = vld [vmem:[%s3 + $0x7f0] sm:$0xff]
    %v710 = vld [vmem:[%s3 + $0x7f8] sm:$0xff]
    %v711 = vld [vmem:[%s3 + $0x800] sm:$0xff]
    %v712 = vld [vmem:[%s3 + $0x808] sm:$0xff]
    %v713 = vld [vmem:[%s3 + $0x810] sm:$0xff]
    %v714 = vld [vmem:[%s3 + $0x818] sm:$0xff]
    %v715 = vld [vmem:[%s3 + $0x820] sm:$0xff]
    %v716 = vld [vmem:[%s3 + $0x828] sm:$0xff]
    %v717 = vld [vmem:[%s3 + $0x830] sm:$0xff]
    %v718 = vld [vmem:[%s3 + $0x838] sm:$0xff]
    %v719 = vld [vmem:[%s3 + $0x840] sm:$0xff]
    %v720 = vld [vmem:[%s3 + $0x848] sm:$0xff]
    %v721 = vld [vmem:[%s3 + $0x850] sm:$0xff]
    %v722 = vld [vmem:[%s3 + $0x858] sm:$0xff]
    %v723 = vld [vmem:[%s3 + $0x860] sm:$0xff]
    %v724 = vld [vmem:[%s3 + $0x868] sm:$0xff]
    %v725 = vld [vmem:[%s3 + $0x870] sm:$0xff]
    %v726 = vld [vmem:[%s3 + $0x878] sm:$0xff]
    %v727 = vld [vmem:[%s3 + $0x880] sm:$0xff]
    %v728 = vld [vmem:[%s3 + $0x888] sm:$0xff]
    %v729 = vld [vmem:[%s3 + $0x890] sm:$0xff]
    %v730 = vld [vmem:[%s3 + $0x898] sm:$0xff]
    %v731 = vld [vmem:[%s3 + $0x8a0] sm:$0xff]
    %v732 = vld [vmem:[%s3 + $0x8a8] sm:$0xff]
    %v733 = vld [vmem:[%s3 + $0x8b0] sm:$0xff]
    %v734 = vld [vmem:[%s3 + $0x8b8] sm:$0xff]
    %v735 = vld [vmem:[%s3 + $0x8c0] sm:$0xff]
    %v736 = vld [vmem:[%s3 + $0x8c8] sm:$0xff]
    %v737 = vld [vmem:[%s3 + $0x8d0] sm:$0xff]
    %v738 = vld [vmem:[%s3 + $0x8d8] sm:$0xff]
    %v739 = vld [vmem:[%s3 + $0x8e0] sm:$0xff]
    %v740 = vld [vmem:[%s3 + $0x8e8] sm:$0xff]
    %v741 = vld [vmem:[%s3 + $0x8f0] sm:$0xff]
    %v742 = vld [vmem:[%s3 + $0x8f8] sm:$0xff]
    %v743 = vld [vmem:[%s3 + $0x900] sm:$0xff]
    %v744 = vld [vmem:[%s3 + $0x908] sm:$0xff]
    %v745 = vld [vmem:[%s3 + $0x910] sm:$0xff]
    %v746 = vld [vmem:[%s3 + $0x918] sm:$0xff]
    %v747 = vld [vmem:[%s3 + $0x920] sm:$0xff]
    %v748 = vld [vmem:[%s3 + $0x928] sm:$0xff]
    %v749 = vld [vmem:[%s3 + $0x930] sm:$0xff]
    %v750 = vld [vmem:[%s3 + $0x938] sm:$0xff]
    %v751 = vld [vmem:[%s3 + $0x940] sm:$0xff]
    %v752 = vld [vmem:[%s3 + $0x948] sm:$0xff]
    %v753 = vld [vmem:[%s3 + $0x950] sm:$0xff]
    %v754 = vld [vmem:[%s3 + $0x958] sm:$0xff]
    %v755 = vld [vmem:[%s3 + $0x960] sm:$0xff]
    %v756 = vld [vmem:[%s3 + $0x968] sm:$0xff]
    %v757 = vld [vmem:[%s3 + $0x970] sm:$0xff]
    %v758 = vld [vmem:[%s3 + $0x978] sm:$0xff]
    %v759 = vld [vmem:[%s3 + $0x980] sm:$0xff]
    %v760 = vld [vmem:[%s3 + $0x988] sm:$0xff]
    %v761 = vld [vmem:[%s3 + $0x990] sm:$0xff]
    %v762 = vld [vmem:[%s3 + $0x998] sm:$0xff]
    %v763 = vld [vmem:[%s3 + $0x9a0] sm:$0xff]
    %v764 = vld [vmem:[%s3 + $0x9a8] sm:$0xff]
    %v765 = vld [vmem:[%s3 + $0x9b0] sm:$0xff]
    %v766 = vld [vmem:[%s3 + $0x9b8] sm:$0xff]
    %v767 = vld [vmem:[%s3 + $0x9c0] sm:$0xff]
    %v768 = vld [vmem:[%s3 + $0x9c8] sm:$0xff]
    %v769 = vld [vmem:[%s3 + $0x9d0] sm:$0xff]
    %v770 = vld [vmem:[%s3 + $0x9d8] sm:$0xff]
    %v771 = vld [vmem:[%s3 + $0x9e0] sm:$0xff]
    %v772 = vld [vmem:[%s3 + $0x9e8] sm:$0xff]
    %v773 = vld [vmem:[%s3 + $0x9f0] sm:$0xff]
    %v774 = vld [vmem:[%s3 + $0x9f8] sm:$0xff]
    %v775 = vld [vmem:[%s4] sm:$0x3]
    %v777 = vlaneseq
    %v778 = vshrl.u32 %v777, 7
    %v779 = vsub.s32 0, %v778
    %v780 = vrot.slane %v775, %v779
    %v781 = vlaneseq
    %v782 = vshrl.u32 %v781, 7
    %v783 = vsub.s32 1, %v782
    %v784 = vrot.slane %v775, %v783
    %787 = vmatprep.subr.mxu0 %v456
    %788 = vmatpush1.msra.mxu0 %v455
    %789 = vmatprep.subr.mxu0 %v458
    %790 = vmatpush1.msra.mxu0 %v457
    %791 = vmatprep.subr.mxu0 %v460
    %792 = vmatpush1.msra.mxu0 %v459
    %793 = vmatprep.subr.mxu0 %v462
    %794 = vmatpush1.msra.mxu0 %v461
    %795 = vmatprep.subr.mxu0 %v464
    %796 = vmatpush1.msra.mxu0 %v463
    %797 = vmatprep.subr.mxu0 %v466
    %798 = vmatpush1.msra.mxu0 %v465
    %799 = vmatprep.subr.mxu0 %v468
    %800 = vmatpush1.msra.mxu0 %v467
    %801 = vmatprep.subr.mxu0 %v470
    %802 = vmatpush1.msra.mxu0 %v469
    %803 = vmatprep.subr.mxu0 %v472
    %804 = vmatpush1.msra.mxu0 %v471
    %805 = vmatprep.subr.mxu0 %v474
    %806 = vmatpush1.msra.mxu0 %v473
    %807 = vmatprep.subr.mxu0 %v476
    %808 = vmatpush1.msra.mxu0 %v475
    %809 = vmatprep.subr.mxu0 %v478
    %810 = vmatpush1.msra.mxu0 %v477
    %811 = vmatprep.subr.mxu0 %v480
    %812 = vmatpush1.msra.mxu0 %v479
    %813 = vmatprep.subr.mxu0 %v482
    %814 = vmatpush1.msra.mxu0 %v481
    %815 = vmatprep.subr.mxu0 %v484
    %816 = vmatpush1.msra.mxu0 %v483
    %817 = vmatprep.subr.mxu0 %v486
    %818 = vmatpush1.msra.mxu0 %v485
    %819 = vmatprep.subr.mxu0 %v488
    %820 = vmatpush1.msra.mxu0 %v487
    %821 = vmatprep.subr.mxu0 %v490
    %822 = vmatpush1.msra.mxu0 %v489
    %823 = vmatprep.subr.mxu0 %v492
    %824 = vmatpush1.msra.mxu0 %v491
    %825 = vmatprep.subr.mxu0 %v494
    %826 = vmatpush1.msra.mxu0 %v493
    %827 = vmatprep.subr.mxu0 %v496
    %828 = vmatpush1.msra.mxu0 %v495
    %829 = vmatprep.subr.mxu0 %v498
    %830 = vmatpush1.msra.mxu0 %v497
    %831 = vmatprep.subr.mxu0 %v500
    %832 = vmatpush1.msra.mxu0 %v499
    %833 = vmatprep.subr.mxu0 %v502
    %834 = vmatpush1.msra.mxu0 %v501
    %835 = vmatprep.subr.mxu0 %v504
    %836 = vmatpush1.msra.mxu0 %v503
    %837 = vmatprep.subr.mxu0 %v506
    %838 = vmatpush1.msra.mxu0 %v505
    %839 = vmatprep.subr.mxu0 %v508
    %840 = vmatpush1.msra.mxu0 %v507
    %841 = vmatprep.subr.mxu0 %v510
    %842 = vmatpush1.msra.mxu0 %v509
    %843 = vmatprep.subr.mxu0 %v512
    %844 = vmatpush1.msra.mxu0 %v511
    %845 = vmatprep.subr.mxu0 %v514
    %846 = vmatpush1.msra.mxu0 %v513
    %847 = vmatprep.subr.mxu0 %v516
    %848 = vmatpush1.msra.mxu0 %v515
    %849 = vmatprep.subr.mxu0 %v518
    %850 = vmatpush1.msra.mxu0 %v517
    %851 = vmatprep.mubr.f32.mxu0 %v436
    %852 = vmatmul.mubr.f32.gmra.mrb[0].mxu0 %v435
    %v853 = vpop.f32.mrb[0].mxu0
    %v854 = vadd.f32 %v780, %v853
    %v855 = vpop.f32.mrb[0].mxu0
    %v856 = vadd.f32 %v784, %v855
    %857 = vmatprep.mubr.f32.mxu0 %v446
    %858 = vmatmul.mubr.f32.gmra.mrb[0].mxu0 %v445
    %v859 = vpop.f32.mrb[0].mxu0
    %v860 = vadd.f32 %v780, %v859
    %v861 = vpop.f32.mrb[0].mxu0
    %v862 = vadd.f32 %v784, %v861
    %863 = vdwg.mxu0
    %864 = vmatprep.subr.mxu0 %v520
    %865 = vmatpush1.msra.mxu0 %v519
    %866 = vmatprep.subr.mxu0 %v522
    %867 = vmatpush1.msra.mxu0 %v521
    %868 = vmatprep.subr.mxu0 %v524
    %869 = vmatpush1.msra.mxu0 %v523
    %870 = vmatprep.subr.mxu0 %v526
    %871 = vmatpush1.msra.mxu0 %v525
    %872 = vmatprep.subr.mxu0 %v528
    %873 = vmatpush1.msra.mxu0 %v527
    %874 = vmatprep.subr.mxu0 %v530
    %875 = vmatpush1.msra.mxu0 %v529
    %876 = vmatprep.subr.mxu0 %v532
    %877 = vmatpush1.msra.mxu0 %v531
    %878 = vmatprep.subr.mxu0 %v534
    %879 = vmatpush1.msra.mxu0 %v533
    %880 = vmatprep.subr.mxu0 %v536
    %881 = vmatpush1.msra.mxu0 %v535
    %882 = vmatprep.subr.mxu0 %v538
    %883 = vmatpush1.msra.mxu0 %v537
    %884 = vmatprep.subr.mxu0 %v540
    %885 = vmatpush1.msra.mxu0 %v539
    %886 = vmatprep.subr.mxu0 %v542
    %887 = vmatpush1.msra.mxu0 %v541
    %888 = vmatprep.subr.mxu0 %v544
    %889 = vmatpush1.msra.mxu0 %v543
    %890 = vmatprep.subr.mxu0 %v546
    %891 = vmatpush1.msra.mxu0 %v545
    %892 = vmatprep.subr.mxu0 %v548
    %893 = vmatpush1.msra.mxu0 %v547
    %894 = vmatprep.subr.mxu0 %v550
    %895 = vmatpush1.msra.mxu0 %v549
    %896 = vmatprep.subr.mxu0 %v552
    %897 = vmatpush1.msra.mxu0 %v551
    %898 = vmatprep.subr.mxu0 %v554
    %899 = vmatpush1.msra.mxu0 %v553
    %900 = vmatprep.subr.mxu0 %v556
    %901 = vmatpush1.msra.mxu0 %v555
    %902 = vmatprep.subr.mxu0 %v558
    %903 = vmatpush1.msra.mxu0 %v557
    %904 = vmatprep.subr.mxu0 %v560
    %905 = vmatpush1.msra.mxu0 %v559
    %906 = vmatprep.subr.mxu0 %v562
    %907 = vmatpush1.msra.mxu0 %v561
    %908 = vmatprep.subr.mxu0 %v564
    %909 = vmatpush1.msra.mxu0 %v563
    %910 = vmatprep.subr.mxu0 %v566
    %911 = vmatpush1.msra.mxu0 %v565
    %912 = vmatprep.subr.mxu0 %v568
    %913 = vmatpush1.msra.mxu0 %v567
    %914 = vmatprep.subr.mxu0 %v570
    %915 = vmatpush1.msra.mxu0 %v569
    %916 = vmatprep.subr.mxu0 %v572
    %917 = vmatpush1.msra.mxu0 %v571
    %918 = vmatprep.subr.mxu0 %v574
    %919 = vmatpush1.msra.mxu0 %v573
    %920 = vmatprep.subr.mxu0 %v576
    %921 = vmatpush1.msra.mxu0 %v575
    %922 = vmatprep.subr.mxu0 %v578
    %923 = vmatpush1.msra.mxu0 %v577
    %924 = vmatprep.subr.mxu0 %v580
    %925 = vmatpush1.msra.mxu0 %v579
    %926 = vmatprep.subr.mxu0 %v582
    %927 = vmatpush1.msra.mxu0 %v581
    %928 = vmatprep.mubr.f32.mxu0 %v438
    %929 = vmatmul.mubr.f32.gmra.mrb[0].mxu0 %v437
    %v930 = vpop.f32.mrb[0].mxu0
    %v931 = vadd.f32 %v854, %v930
    %v932 = vpop.f32.mrb[0].mxu0
    %v933 = vadd.f32 %v856, %v932
    %934 = vmatprep.mubr.f32.mxu0 %v448
    %935 = vmatmul.mubr.f32.gmra.mrb[0].mxu0 %v447
    %v936 = vpop.f32.mrb[0].mxu0
    %v937 = vadd.f32 %v860, %v936
    %v938 = vpop.f32.mrb[0].mxu0
    %v939 = vadd.f32 %v862, %v938
    %940 = vdwg.mxu0
    %941 = vmatprep.subr.mxu0 %v584
    %942 = vmatpush1.msra.mxu0 %v583
    %943 = vmatprep.subr.mxu0 %v586
    %944 = vmatpush1.msra.mxu0 %v585
    %945 = vmatprep.subr.mxu0 %v588
    %946 = vmatpush1.msra.mxu0 %v587
    %947 = vmatprep.subr.mxu0 %v590
    %948 = vmatpush1.msra.mxu0 %v589
    %949 = vmatprep.subr.mxu0 %v592
    %950 = vmatpush1.msra.mxu0 %v591
    %951 = vmatprep.subr.mxu0 %v594
    %952 = vmatpush1.msra.mxu0 %v593
    %953 = vmatprep.subr.mxu0 %v596
    %954 = vmatpush1.msra.mxu0 %v595
    %955 = vmatprep.subr.mxu0 %v598
    %956 = vmatpush1.msra.mxu0 %v597
    %957 = vmatprep.subr.mxu0 %v600
    %958 = vmatpush1.msra.mxu0 %v599
    %959 = vmatprep.subr.mxu0 %v602
    %960 = vmatpush1.msra.mxu0 %v601
    %961 = vmatprep.subr.mxu0 %v604
    %962 = vmatpush1.msra.mxu0 %v603
    %963 = vmatprep.subr.mxu0 %v606
    %964 = vmatpush1.msra.mxu0 %v605
    %965 = vmatprep.subr.mxu0 %v608
    %966 = vmatpush1.msra.mxu0 %v607
    %967 = vmatprep.subr.mxu0 %v610
    %968 = vmatpush1.msra.mxu0 %v609
    %969 = vmatprep.subr.mxu0 %v612
    %970 = vmatpush1.msra.mxu0 %v611
    %971 = vmatprep.subr.mxu0 %v614
    %972 = vmatpush1.msra.mxu0 %v613
    %973 = vmatprep.subr.mxu0 %v616
    %974 = vmatpush1.msra.mxu0 %v615
    %975 = vmatprep.subr.mxu0 %v618
    %976 = vmatpush1.msra.mxu0 %v617
    %977 = vmatprep.subr.mxu0 %v620
    %978 = vmatpush1.msra.mxu0 %v619
    %979 = vmatprep.subr.mxu0 %v622
    %980 = vmatpush1.msra.mxu0 %v621
    %981 = vmatprep.subr.mxu0 %v624
    %982 = vmatpush1.msra.mxu0 %v623
    %983 = vmatprep.subr.mxu0 %v626
    %984 = vmatpush1.msra.mxu0 %v625
    %985 = vmatprep.subr.mxu0 %v628
    %986 = vmatpush1.msra.mxu0 %v627
    %987 = vmatprep.subr.mxu0 %v630
    %988 = vmatpush1.msra.mxu0 %v629
    %989 = vmatprep.subr.mxu0 %v632
    %990 = vmatpush1.msra.mxu0 %v631
    %991 = vmatprep.subr.mxu0 %v634
    %992 = vmatpush1.msra.mxu0 %v633
    %993 = vmatprep.subr.mxu0 %v636
    %994 = vmatpush1.msra.mxu0 %v635
    %995 = vmatprep.subr.mxu0 %v638
    %996 = vmatpush1.msra.mxu0 %v637
    %997 = vmatprep.subr.mxu0 %v640
    %998 = vmatpush1.msra.mxu0 %v639
    %999 = vmatprep.subr.mxu0 %v642
    %1000 = vmatpush1.msra.mxu0 %v641
    %1001 = vmatprep.subr.mxu0 %v644
    %1002 = vmatpush1.msra.mxu0 %v643
    %1003 = vmatprep.subr.mxu0 %v646
    %1004 = vmatpush1.msra.mxu0 %v645
    %1005 = vmatprep.mubr.f32.mxu0 %v440
    %1006 = vmatmul.mubr.f32.gmra.mrb[0].mxu0 %v439
    %v1007 = vpop.f32.mrb[0].mxu0
    %v1008 = vadd.f32 %v931, %v1007
    %v1009 = vpop.f32.mrb[0].mxu0
    %v1010 = vadd.f32 %v933, %v1009
    %1011 = vmatprep.mubr.f32.mxu0 %v450
    %1012 = vmatmul.mubr.f32.gmra.mrb[0].mxu0 %v449
    %v1013 = vpop.f32.mrb[0].mxu0
    %v1014 = vadd.f32 %v937, %v1013
    %v1015 = vpop.f32.mrb[0].mxu0
    %v1016 = vadd.f32 %v939, %v1015
    %1017 = vdwg.mxu0
    %1018 = vmatprep.subr.mxu0 %v648
    %1019 = vmatpush1.msra.mxu0 %v647
    %1020 = vmatprep.subr.mxu0 %v650
    %1021 = vmatpush1.msra.mxu0 %v649
    %1022 = vmatprep.subr.mxu0 %v652
    %1023 = vmatpush1.msra.mxu0 %v651
    %1024 = vmatprep.subr.mxu0 %v654
    %1025 = vmatpush1.msra.mxu0 %v653
    %1026 = vmatprep.subr.mxu0 %v656
    %1027 = vmatpush1.msra.mxu0 %v655
    %1028 = vmatprep.subr.mxu0 %v658
    %1029 = vmatpush1.msra.mxu0 %v657
    %1030 = vmatprep.subr.mxu0 %v660
    %1031 = vmatpush1.msra.mxu0 %v659
    %1032 = vmatprep.subr.mxu0 %v662
    %1033 = vmatpush1.msra.mxu0 %v661
    %1034 = vmatprep.subr.mxu0 %v664
    %1035 = vmatpush1.msra.mxu0 %v663
    %1036 = vmatprep.subr.mxu0 %v666
    %1037 = vmatpush1.msra.mxu0 %v665
    %1038 = vmatprep.subr.mxu0 %v668
    %1039 = vmatpush1.msra.mxu0 %v667
    %1040 = vmatprep.subr.mxu0 %v670
    %1041 = vmatpush1.msra.mxu0 %v669
    %1042 = vmatprep.subr.mxu0 %v672
    %1043 = vmatpush1.msra.mxu0 %v671
    %1044 = vmatprep.subr.mxu0 %v674
    %1045 = vmatpush1.msra.mxu0 %v673
    %1046 = vmatprep.subr.mxu0 %v676
    %1047 = vmatpush1.msra.mxu0 %v675
    %1048 = vmatprep.subr.mxu0 %v678
    %1049 = vmatpush1.msra.mxu0 %v677
    %1050 = vmatprep.subr.mxu0 %v680
    %1051 = vmatpush1.msra.mxu0 %v679
    %1052 = vmatprep.subr.mxu0 %v682
    %1053 = vmatpush1.msra.mxu0 %v681
    %1054 = vmatprep.subr.mxu0 %v684
    %1055 = vmatpush1.msra.mxu0 %v683
    %1056 = vmatprep.subr.mxu0 %v686
    %1057 = vmatpush1.msra.mxu0 %v685
    %1058 = vmatprep.subr.mxu0 %v688
    %1059 = vmatpush1.msra.mxu0 %v687
    %1060 = vmatprep.subr.mxu0 %v690
    %1061 = vmatpush1.msra.mxu0 %v689
    %1062 = vmatprep.subr.mxu0 %v692
    %1063 = vmatpush1.msra.mxu0 %v691
    %1064 = vmatprep.subr.mxu0 %v694
    %1065 = vmatpush1.msra.mxu0 %v693
    %1066 = vmatprep.subr.mxu0 %v696
    %1067 = vmatpush1.msra.mxu0 %v695
    %1068 = vmatprep.subr.mxu0 %v698
    %1069 = vmatpush1.msra.mxu0 %v697
    %1070 = vmatprep.subr.mxu0 %v700
    %1071 = vmatpush1.msra.mxu0 %v699
    %1072 = vmatprep.subr.mxu0 %v702
    %1073 = vmatpush1.msra.mxu0 %v701
    %1074 = vmatprep.subr.mxu0 %v704
    %1075 = vmatpush1.msra.mxu0 %v703
    %1076 = vmatprep.subr.mxu0 %v706
    %1077 = vmatpush1.msra.mxu0 %v705
    %1078 = vmatprep.subr.mxu0 %v708
    %1079 = vmatpush1.msra.mxu0 %v707
    %1080 = vmatprep.subr.mxu0 %v710
    %1081 = vmatpush1.msra.mxu0 %v709
    %1082 = vmatprep.mubr.f32.mxu0 %v442
    %1083 = vmatmul.mubr.f32.gmra.mrb[0].mxu0 %v441
    %v1084 = vpop.f32.mrb[0].mxu0
    %v1085 = vadd.f32 %v1008, %v1084
    %v1086 = vpop.f32.mrb[0].mxu0
    %v1087 = vadd.f32 %v1010, %v1086
    %1088 = vmatprep.mubr.f32.mxu0 %v452
    %1089 = vmatmul.mubr.f32.gmra.mrb[0].mxu0 %v451
    %v1090 = vpop.f32.mrb[0].mxu0
    %v1091 = vadd.f32 %v1014, %v1090
    %v1092 = vpop.f32.mrb[0].mxu0
    %v1093 = vadd.f32 %v1016, %v1092
    %1094 = vdwg.mxu0
    %1095 = vmatprep.subr.mxu0 %v712
    %1096 = vmatpush1.msra.mxu0 %v711
    %1097 = vmatprep.subr.mxu0 %v714
    %1098 = vmatpush1.msra.mxu0 %v713
    %1099 = vmatprep.subr.mxu0 %v716
    %1100 = vmatpush1.msra.mxu0 %v715
    %1101 = vmatprep.subr.mxu0 %v718
    %1102 = vmatpush1.msra.mxu0 %v717
    %1103 = vmatprep.subr.mxu0 %v720
    %1104 = vmatpush1.msra.mxu0 %v719
    %1105 = vmatprep.subr.mxu0 %v722
    %1106 = vmatpush1.msra.mxu0 %v721
    %1107 = vmatprep.subr.mxu0 %v724
    %1108 = vmatpush1.msra.mxu0 %v723
    %1109 = vmatprep.subr.mxu0 %v726
    %1110 = vmatpush1.msra.mxu0 %v725
    %1111 = vmatprep.subr.mxu0 %v728
    %1112 = vmatpush1.msra.mxu0 %v727
    %1113 = vmatprep.subr.mxu0 %v730
    %1114 = vmatpush1.msra.mxu0 %v729
    %1115 = vmatprep.subr.mxu0 %v732
    %1116 = vmatpush1.msra.mxu0 %v731
    %1117 = vmatprep.subr.mxu0 %v734
    %1118 = vmatpush1.msra.mxu0 %v733
    %1119 = vmatprep.subr.mxu0 %v736
    %1120 = vmatpush1.msra.mxu0 %v735
    %1121 = vmatprep.subr.mxu0 %v738
    %1122 = vmatpush1.msra.mxu0 %v737
    %1123 = vmatprep.subr.mxu0 %v740
    %1124 = vmatpush1.msra.mxu0 %v739
    %1125 = vmatprep.subr.mxu0 %v742
    %1126 = vmatpush1.msra.mxu0 %v741
    %1127 = vmatprep.subr.mxu0 %v744
    %1128 = vmatpush1.msra.mxu0 %v743
    %1129 = vmatprep.subr.mxu0 %v746
    %1130 = vmatpush1.msra.mxu0 %v745
    %1131 = vmatprep.subr.mxu0 %v748
    %1132 = vmatpush1.msra.mxu0 %v747
    %1133 = vmatprep.subr.mxu0 %v750
    %1134 = vmatpush1.msra.mxu0 %v749
    %1135 = vmatprep.subr.mxu0 %v752
    %1136 = vmatpush1.msra.mxu0 %v751
    %1137 = vmatprep.subr.mxu0 %v754
    %1138 = vmatpush1.msra.mxu0 %v753
    %1139 = vmatprep.subr.mxu0 %v756
    %1140 = vmatpush1.msra.mxu0 %v755
    %1141 = vmatprep.subr.mxu0 %v758
    %1142 = vmatpush1.msra.mxu0 %v757
    %1143 = vmatprep.subr.mxu0 %v760
    %1144 = vmatpush1.msra.mxu0 %v759
    %1145 = vmatprep.subr.mxu0 %v762
    %1146 = vmatpush1.msra.mxu0 %v761
    %1147 = vmatprep.subr.mxu0 %v764
    %1148 = vmatpush1.msra.mxu0 %v763
    %1149 = vmatprep.subr.mxu0 %v766
    %1150 = vmatpush1.msra.mxu0 %v765
    %1151 = vmatprep.subr.mxu0 %v768
    %1152 = vmatpush1.msra.mxu0 %v767
    %1153 = vmatprep.subr.mxu0 %v770
    %1154 = vmatpush1.msra.mxu0 %v769
    %1155 = vmatprep.subr.mxu0 %v772
    %1156 = vmatpush1.msra.mxu0 %v771
    %1157 = vmatprep.subr.mxu0 %v774
    %1158 = vmatpush1.msra.mxu0 %v773
    %1159 = vmatprep.mubr.f32.mxu0 %v444
    %1160 = vmatmul.mubr.f32.gmra.mrb[0].mxu0 %v443
    %v1161 = vpop.f32.mrb[0].mxu0
    %v1162 = vadd.f32 %v1085, %v1161
    %v1163 = vpop.f32.mrb[0].mxu0
    %v1164 = vadd.f32 %v1087, %v1163
    %1165 = vmatprep.mubr.f32.mxu0 %v454
    %1166 = vmatmul.mubr.f32.gmra.mrb[0].mxu0 %v453
    %v1167 = vpop.f32.mrb[0].mxu0
    %v1168 = vadd.f32 %v1091, %v1167
    %v1169 = vpop.f32.mrb[0].mxu0
    %v1170 = vadd.f32 %v1093, %v1169
    %1171 = vdwg.mxu0
    %v1172 = vmax.f32 %v1162, 0.0
    %v1173 = vmax.f32 %v1164, 0.0
    %v1174 = vmax.f32 %v1168, 0.0
    %v1175 = vmax.f32 %v1170, 0.0
    %1176 = vst [vmem:[#allocation5] sm:$0xff] %v1172
    %vm1177 = vcmask 261120
    %1178 = vst.msk [vmem:[#allocation5 + $0x8] sm:$0xff] %vm1177, %v1173
    %1179 = vst [vmem:[#allocation5 + $0x10] sm:$0xff] %v1174
    %1180 = vst.msk [vmem:[#allocation5 + $0x18] sm:$0xff] %vm1177, %v1175
    // Predicated region
    $region22: #{tpu_custom_call.1} parent=1 // pred_check
      _
    $region23: #{tpu_custom_call.1} parent=1 // pred_check_branch
      %1182 = sbr.rel (0) target = $region25
    $region24: #{tpu_custom_call.1} parent=1 // pred_region
      %s1184 = ssub.s32 512, 512
      %1185 = vsyncadd [#allocation6], %s1184
      %s1186 = sshll.u32 [#allocation5], 4
      %s1187 = int_to_ptr.vmem [resolvable:$true] %s1186
      %1192 = dma.vmem_to_hbm [thread:$0]  %s1187, 512, %s5, [#allocation6], 256, 256, 16
    $region25: #{tpu_custom_call.1} parent=1 // pred_fallthru
      _
    // Predicated region
    $region26: #{tpu_custom_call.1} parent=1 // pred_check
      _
    $region27: #{tpu_custom_call.1} parent=1 // pred_check_branch
      %1194 = sbr.rel (0) target = $region29
    $region28: #{tpu_custom_call.1} parent=1 // pred_region
      %1195 = dma.done [#allocation6], 512
    $region29: #{tpu_custom_call.1} parent=1 // pred_fallthru
      _
    %1196 = vsyncpa [#allocation6], 1

</llo_original>
